<compile_context>
chip_gen: v7x
topology: tpu7x:2x2x1
jax: 0.10.0
libtpu: 0.0.40
codegen_flags: <defaults>
</compile_context>

<pallas_src>
import math
from functools import partial

import jax
import jax.numpy as jnp
from jax.experimental import pallas as pl
from jax.experimental.pallas import tpu as pltpu

# ---- hyperparameters (the reference file leaves these as globals; small picks) ----
D_MODEL = 32
D_K = 8
D_V = 8
N_HEADS = 4
D_FF = 64
D_FF_PAD = 128                 # FFN hidden padded to a full 128-lane vreg
N_EN_LAYERS = 2
SRC_VOCAB_SIZE = 16 * 16 + 4   # build_key(): 256 two-char tokens + {SS,EE,PP,''}
LN_EPS = 1e-5                  # PyTorch nn.LayerNorm default


def _layer_norm(v, g, b):
    mu = jnp.mean(v, axis=-1, keepdims=True)
    var = jnp.mean((v - mu) ** 2, axis=-1, keepdims=True)
    return (v - mu) * jax.lax.rsqrt(var + LN_EPS) * g + b


def _encoder_kernel(Bt, L, D, H, dk, dv, dffp,
                    x_ref, bias_ref, wqkv_ref, bqkv_ref, wo_ref,
                    w1_ref, w2_ref, vec_ref, y_ref, attn_ref):
    """One (batch-tile, layer) grid step.  The encoder activation is carried
    across the inner 'arbitrary' layer axis inside the resident y output block."""
    N = Bt * L
    scale = 1.0 / math.sqrt(dk)

    # layer 0: seed the carried activation from the embedded+PE input.
    @pl.when(pl.program_id(1) == 0)
    def _():
        y_ref[...] = x_ref[...]

    x2 = y_ref[...].reshape(N, D)                          # (N, D) f32 carried act

    # this layer's parameters (weights bf16, vectors f32); one layer in VMEM.
    wqkv = wqkv_ref[0]                                     # (H, D, 3*dk) bf16
    bqkv = bqkv_ref[0]                                     # (H, 1, 3*dk) f32
    wo = wo_ref[0]                                         # (H, dv, D)   bf16
    w1 = w1_ref[0]                                         # (D, dffp)    bf16
    w2 = w2_ref[0]                                         # (dffp, D)    bf16
    bo = vec_ref[0, 0:1, :D]                               # (1, D) f32
    g1 = vec_ref[0, 1:2, :D]
    be1 = vec_ref[0, 2:3, :D]
    c1 = vec_ref[0, 3:4, :dffp]
    c2 = vec_ref[0, 4:5, :D]
    g2 = vec_ref[0, 5:6, :D]
    be2 = vec_ref[0, 6:7, :D]

    # ---- fused Q/K/V projection, batched over heads (no per-head lane slicing) ----
    xh = jnp.broadcast_to(x2.astype(jnp.bfloat16)[None], (H, N, D))
    qkvh = jnp.einsum('hnd,hdc->hnc', xh, wqkv,
                      preferred_element_type=jnp.float32) + bqkv       # (H, N, 3*dk)
    qh = qkvh[:, :, 0:dk].reshape(H * Bt, L, dk)
    kh = qkvh[:, :, dk:2 * dk].reshape(H * Bt, L, dk)
    vh = qkvh[:, :, 2 * dk:2 * dk + dv].reshape(H * Bt, L, dv)

    # additive key-padding bias, broadcast over heads (no H-way concat)
    bias_x = jnp.broadcast_to(bias_ref[...][None],
                              (H, Bt, 1, L)).reshape(H * Bt, 1, L)

    # ---- scaled-dot-product attention, batched over (head, batch) ----
    scores = jnp.einsum('xqd,xkd->xqk', qh, kh,
                        preferred_element_type=jnp.float32) * scale + bias_x
    scores = scores - jnp.max(scores, axis=-1, keepdims=True)
    e = jnp.exp(scores)
    a = e / jnp.sum(e, axis=-1, keepdims=True)             # exact softmax (H*Bt, L, L)
    ctx = jnp.einsum('xqk,xkd->xqd', a, vh,
                     preferred_element_type=jnp.float32)   # (H*Bt, L, dv)

    # ---- output projection: per-head matmul + sum over heads (no lane re-concat) ----
    proj = jnp.einsum('hnv,hvd->hnd',
                      ctx.reshape(H, N, dv).astype(jnp.bfloat16), wo,
                      preferred_element_type=jnp.float32)  # (H, N, D)
    attn_out = jnp.sum(proj, axis=0) + bo                  # (N, D)

    # residual + LayerNorm
    y1 = _layer_norm(attn_out + x2, g1, be1)

    # position-wise FFN (Conv1d k=1 == matmul; hidden zero-padded to 128 lanes)
    h1 = jnp.maximum(jnp.dot(y1.astype(jnp.bfloat16), w1,
                             preferred_element_type=jnp.float32) + c1, 0.0)
    f2 = jnp.dot(h1.astype(jnp.bfloat16), w2,
                 preferred_element_type=jnp.float32) + c2
    out = _layer_norm(f2 + y1, g2, be2)

    # carry activation in the resident y block; stream this layer's attention
    y_ref[...] = out.reshape(Bt, L, D)
    attn_ref[...] = a.reshape(1, H, Bt, L, L).astype(attn_ref.dtype)


def pack_params(layers):
    """One-time packing: per-layer params stacked head-blocked so the kernel
    never has to slice/concat heads.  Matmul weights bf16, vectors f32."""
    H, dk, dv, D, dff, dffp = N_HEADS, D_K, D_V, D_MODEL, D_FF, D_FF_PAD
    wqkv_l, bqkv_l, wo_l, w1_l, w2_l, vec_l = [], [], [], [], [], []

    def row(v, width=128):
        v = jnp.asarray(v, jnp.float32).reshape(-1)
        return jnp.pad(v, (0, width - v.shape[0]))

    for p in layers:
        wq = p["wq"].reshape(D, H, dk)                     # columns are head-major
        wk = p["wk"].reshape(D, H, dk)
        wv = p["wv"].reshape(D, H, dv)
        wqkv_l.append(jnp.transpose(
            jnp.concatenate([wq, wk, wv], axis=-1), (1, 0, 2)))      # (H, D, 3*dk)
        bqkv_l.append(jnp.concatenate([p["bq"].reshape(H, 1, dk),
                                       p["bk"].reshape(H, 1, dk),
                                       p["bv"].reshape(H, 1, dv)], axis=-1))
        wo_l.append(p["wo"].reshape(H, dv, D))                       # rows head-major
        # FFN hidden dim zero-padded to 128 lanes (padded cols/rows contribute 0)
        w1_l.append(jnp.pad(p["w1"], ((0, 0), (0, dffp - dff))))
        w2_l.append(jnp.pad(p["w2"], ((0, dffp - dff), (0, 0))))
        c1_pad = jnp.pad(p["c1"].reshape(-1), (0, dffp - dff))
        vec_l.append(jnp.stack([row(p["bo"]), row(p["g1"]), row(p["be1"]),
                                row(c1_pad), row(p["c2"]), row(p["g2"]),
                                row(p["be2"]), jnp.zeros((128,), jnp.float32)]))
    return {
        "wqkv": jnp.stack(wqkv_l).astype(jnp.bfloat16),    # (NL, H, D, 3*dk)
        "bqkv": jnp.stack(bqkv_l).astype(jnp.float32),     # (NL, H, 1, 3*dk)
        "wo": jnp.stack(wo_l).astype(jnp.bfloat16),        # (NL, H, dv, D)
        "w1": jnp.stack(w1_l).astype(jnp.bfloat16),        # (NL, D, dffp)
        "w2": jnp.stack(w2_l).astype(jnp.bfloat16),        # (NL, dffp, D)
        "vecs": jnp.stack(vec_l).astype(jnp.float32),      # (NL, 8, 128)
    }


def _pick_bt(B, L):
    """Batch tile: enough rows per step for the MXU, but keep >= 2 grid steps
    along the batch axis when possible (v7x megacore / input-output overlap)."""
    bt = max(1, min(B, 256 // max(L, 1)))
    while B % bt:
        bt -= 1
    if B // bt < 2 and B >= 2:
        bt = B // 2
        while B % bt:
            bt -= 1
    return bt


def encoder_layers_fused(x, bias, packed):
    """All encoder layers in one pallas_call.

    x: (B, L, D) f32; bias: (B, 1, L) f32 additive pad-key bias (0 or -1e9).
    Returns y (B, L, D) f32 and attn (NL, H, B, L, L) bf16.
    """
    B, L, D = x.shape
    NL, H, dk, dv, dffp = N_EN_LAYERS, N_HEADS, D_K, D_V, D_FF_PAD
    Bt = _pick_bt(B, L)

    kernel = partial(_encoder_kernel, Bt, L, D, H, dk, dv, dffp)

    y, attn = pl.pallas_call(
        kernel,
        grid=(B // Bt, NL),   # (batch tiles, layers) — layer axis innermost
        in_specs=[
            pl.BlockSpec((Bt, L, D), lambda b, l: (b, 0, 0)),            # x (seed at l==0)
            pl.BlockSpec((Bt, 1, L), lambda b, l: (b, 0, 0)),            # pad-key bias
            pl.BlockSpec((1, H, D, 3 * dk), lambda b, l: (l, 0, 0, 0)),  # per-head QKV W
            pl.BlockSpec((1, H, 1, 3 * dk), lambda b, l: (l, 0, 0, 0)),  # per-head QKV b
            pl.BlockSpec((1, H, dv, D), lambda b, l: (l, 0, 0, 0)),      # per-head out-proj
            pl.BlockSpec((1, D, dffp), lambda b, l: (l, 0, 0)),          # FFN conv1 W
            pl.BlockSpec((1, dffp, D), lambda b, l: (l, 0, 0)),          # FFN conv2 W
            pl.BlockSpec((1, 8, 128), lambda b, l: (l, 0, 0)),           # packed vectors
        ],
        out_specs=[
            pl.BlockSpec((Bt, L, D), lambda b, l: (b, 0, 0)),            # y (resident over l)
            pl.BlockSpec((1, H, Bt, L, L), lambda b, l: (l, 0, b, 0, 0)),  # attn, layer-leading
        ],
        out_shape=[
            jax.ShapeDtypeStruct((B, L, D), jnp.float32),
            jax.ShapeDtypeStruct((NL, H, B, L, L), jnp.bfloat16),
        ],
        compiler_params=pltpu.CompilerParams(
            dimension_semantics=("parallel", "arbitrary"),
            vmem_limit_bytes=32 * 1024 * 1024),
    )(x, bias, packed["wqkv"], packed["bqkv"], packed["wo"],
      packed["w1"], packed["w2"], packed["vecs"])
    return y, attn


def positional_encoding(max_len, d_model):
    position = jnp.arange(max_len, dtype=jnp.float32)[:, None]
    div_term = jnp.exp(jnp.arange(0, d_model, 2, dtype=jnp.float32)
                       * (-math.log(10000.0) / d_model))
    pe = jnp.zeros((max_len, d_model), jnp.float32)
    pe = pe.at[:, 0::2].set(jnp.sin(position * div_term))
    pe = pe.at[:, 1::2].set(jnp.cos(position * div_term))
    return pe


def make_encoder_state(params):
    """One-time setup (hoisted out of the per-call forward)."""
    return {"emb": params["emb"],
            "pe": positional_encoding(5000, D_MODEL),
            "packed": pack_params(params["layers"])}


def encoder_forward(enc_inputs, state):
    """enc_inputs: (B, L) int32 token ids.  Returns (enc_outputs, [attn per layer])."""
    B, L = enc_inputs.shape
    # embedding lookup + positional encoding (glue outside the kernel)
    emb = jnp.take(state["emb"], enc_inputs, axis=0)           # (B, L, D)
    x = (emb + state["pe"][:L][None, :, :]).astype(jnp.float32)
    # TODO(synk): nn.Dropout(p=0.1) inside PositionalEncoding omitted (eval-mode forward).

    # get_attn_pad_mask as a compact additive key bias: -1e9 where key == PAD(0)
    bias = jnp.where(enc_inputs == 0, jnp.float32(-1e9),
                     jnp.float32(0.0)).reshape(B, 1, L)

    y, attn = encoder_layers_fused(x, bias, state["packed"])

    # attn (NL, H, B, L, L) bf16 -> list of per-layer (B, H, L, L)
    # (kept bf16: halves the dominant HBM writeback; cast downstream if needed)
    attns = [jnp.transpose(attn[i], (1, 0, 2, 3)) for i in range(N_EN_LAYERS)]
    return y, attns


def init_params(key):
    def lin(k, shape, scale=0.05):
        return jax.random.normal(k, shape, jnp.float32) * scale

    keys = jax.random.split(key, 1 + N_EN_LAYERS)
    emb = jax.random.normal(keys[0], (SRC_VOCAB_SIZE, D_MODEL), jnp.float32) * 0.1

    layers = []
    for i in range(N_EN_LAYERS):
        lk = jax.random.split(keys[1 + i], 12)
        p = {
            "wq": lin(lk[0], (D_MODEL, N_HEADS * D_K)),
            "bq": lin(lk[1], (1, N_HEADS * D_K)),
            "wk": lin(lk[2], (D_MODEL, N_HEADS * D_K)),
            "bk": lin(lk[3], (1, N_HEADS * D_K)),
            "wv": lin(lk[4], (D_MODEL, N_HEADS * D_V)),
            "bv": lin(lk[5], (1, N_HEADS * D_V)),
            "wo": lin(lk[6], (N_HEADS * D_V, D_MODEL)),
            "bo": lin(lk[7], (1, D_MODEL)),
            "g1": jnp.ones((1, D_MODEL), jnp.float32),
            "be1": jnp.zeros((1, D_MODEL), jnp.float32),
            "w1": lin(lk[8], (D_MODEL, D_FF)),    # conv1: Conv1d(d_model, d_ff, 1)
            "c1": lin(lk[9], (1, D_FF)),
            "w2": lin(lk[10], (D_FF, D_MODEL)),   # conv2: Conv1d(d_ff, d_model, 1)
            "c2": lin(lk[11], (1, D_MODEL)),
            "g2": jnp.ones((1, D_MODEL), jnp.float32),
            "be2": jnp.zeros((1, D_MODEL), jnp.float32),
        }
        layers.append(p)
    return {"emb": emb, "layers": layers}


if __name__ == "__main__":
    key = jax.random.PRNGKey(0)
    pkey, ikey = jax.random.split(key)
    params = init_params(pkey)
    state = make_encoder_state(params)          # one-time packing (hoisted)

    B, L = 2, 8
    enc_inputs = jax.random.randint(ikey, (B, L), 0, SRC_VOCAB_SIZE, dtype=jnp.int32)
    # force some PAD (id 0) tokens so the attention mask path is exercised
    enc_inputs = enc_inputs.at[:, -2:].set(0)

    fwd = jax.jit(encoder_forward)
    enc_outputs, enc_self_attns = fwd(enc_inputs, state)
    jax.block_until_ready(enc_outputs)
    for a in enc_self_attns:
        jax.block_until_ready(a)

    assert enc_outputs.shape == (B, L, D_MODEL)
    assert len(enc_self_attns) == N_EN_LAYERS
    assert enc_self_attns[0].shape == (B, N_HEADS, L, L)
    print("KERNEL_OK")
</pallas_src>

<mosaic_0001>
module attributes {stable_mosaic.version = 11 : i64} {
  func.func @_encoder_kernel(%arg0: i32, %arg1: i32, %arg2: memref<1x8x32xf32, #tpu.memory_space<vmem>>, %arg3: memref<1x1x8xf32, #tpu.memory_space<vmem>>, %arg4: memref<1x4x32x24xbf16, #tpu.memory_space<vmem>>, %arg5: memref<1x4x1x24xf32, #tpu.memory_space<vmem>>, %arg6: memref<1x4x8x32xbf16, #tpu.memory_space<vmem>>, %arg7: memref<1x32x128xbf16, #tpu.memory_space<vmem>>, %arg8: memref<1x128x32xbf16, #tpu.memory_space<vmem>>, %arg9: memref<1x8x128xf32, #tpu.memory_space<vmem>>, %arg10: memref<1x8x32xf32, #tpu.memory_space<vmem>>, %arg11: memref<1x4x1x8x8xbf16, #tpu.memory_space<vmem>>) attributes {dimension_semantics = [#tpu.dimension_semantics<parallel>, #tpu.dimension_semantics<arbitrary>], iteration_bounds = array<i64: 2, 2>, scalar_prefetch = 0 : i64, scratch_operands = 0 : i64, tpu.core_type = #tpu.core_type<tc>, window_params = [{transform_indices = @transform_0, window_bounds = array<i64: 1, 8, 32>}, {transform_indices = @transform_1, window_bounds = array<i64: 1, 1, 8>}, {transform_indices = @transform_2, window_bounds = array<i64: 1, 4, 32, 24>}, {transform_indices = @transform_3, window_bounds = array<i64: 1, 4, 1, 24>}, {transform_indices = @transform_4, window_bounds = array<i64: 1, 4, 8, 32>}, {transform_indices = @transform_5, window_bounds = array<i64: 1, 32, 128>}, {transform_indices = @transform_6, window_bounds = array<i64: 1, 128, 32>}, {transform_indices = @transform_7, window_bounds = array<i64: 1, 8, 128>}, {transform_indices = @transform_8, window_bounds = array<i64: 1, 8, 32>}, {transform_indices = @transform_9, window_bounds = array<i64: 1, 4, 1, 8, 8>}]} {
    %c0_i32 = arith.constant 0 : i32
    %0 = arith.cmpi eq, %arg1, %c0_i32 : i32
    %1 = arith.extui %0 : i1 to i32
    %c0_i32_0 = arith.constant 0 : i32
    %2 = arith.cmpi ne, %1, %c0_i32_0 : i32
    scf.if %2 {
      %c0_67 = arith.constant 0 : index
      %c0_68 = arith.constant 0 : index
      %c0_69 = arith.constant 0 : index
      %125 = vector.load %arg2[%c0_67, %c0_68, %c0_69] : memref<1x8x32xf32, #tpu.memory_space<vmem>>, vector<1x8x32xf32>
      %c0_70 = arith.constant 0 : index
      %c0_71 = arith.constant 0 : index
      %c0_72 = arith.constant 0 : index
      %126 = vector.load %arg10[%c0_70, %c0_71, %c0_72] : memref<1x8x32xf32, #tpu.memory_space<vmem>>, vector<1x8x32xf32>
      tpu.vector_store %arg10[%c0_70, %c0_71, %c0_72], %125 {strides = array<i32>} : memref<1x8x32xf32, #tpu.memory_space<vmem>>, vector<1x8x32xf32>,
    } else {
    }
    %c0 = arith.constant 0 : index
    %c0_1 = arith.constant 0 : index
    %c0_2 = arith.constant 0 : index
    %3 = vector.load %arg10[%c0, %c0_1, %c0_2] : memref<1x8x32xf32, #tpu.memory_space<vmem>>, vector<1x8x32xf32>
    %4 = vector.shape_cast %3 : vector<1x8x32xf32> to vector<8x32xf32>
    %c0_3 = arith.constant 0 : index
    %c0_4 = arith.constant 0 : index
    %c0_5 = arith.constant 0 : index
    %c0_6 = arith.constant 0 : index
    %5 = vector.load %arg4[%c0_3, %c0_4, %c0_5, %c0_6] : memref<1x4x32x24xbf16, #tpu.memory_space<vmem>>, vector<1x4x32x24xbf16>
    %6 = vector.shape_cast %5 : vector<1x4x32x24xbf16> to vector<4x32x24xbf16>
    %c0_7 = arith.constant 0 : index
    %c0_8 = arith.constant 0 : index
    %c0_9 = arith.constant 0 : index
    %c0_10 = arith.constant 0 : index
    %7 = vector.load %arg5[%c0_7, %c0_8, %c0_9, %c0_10] : memref<1x4x1x24xf32, #tpu.memory_space<vmem>>, vector<1x4x1x24xf32>
    %8 = vector.shape_cast %7 : vector<1x4x1x24xf32> to vector<4x1x24xf32>
    %c0_11 = arith.constant 0 : index
    %c0_12 = arith.constant 0 : index
    %c0_13 = arith.constant 0 : index
    %c0_14 = arith.constant 0 : index
    %9 = vector.load %arg6[%c0_11, %c0_12, %c0_13, %c0_14] : memref<1x4x8x32xbf16, #tpu.memory_space<vmem>>, vector<1x4x8x32xbf16>
    %10 = vector.shape_cast %9 : vector<1x4x8x32xbf16> to vector<4x8x32xbf16>
    %c0_15 = arith.constant 0 : index
    %c0_16 = arith.constant 0 : index
    %c0_17 = arith.constant 0 : index
    %11 = vector.load %arg7[%c0_15, %c0_16, %c0_17] : memref<1x32x128xbf16, #tpu.memory_space<vmem>>, vector<1x32x128xbf16>
    %12 = vector.shape_cast %11 : vector<1x32x128xbf16> to vector<32x128xbf16>
    %c0_18 = arith.constant 0 : index
    %c0_19 = arith.constant 0 : index
    %c0_20 = arith.constant 0 : index
    %13 = vector.load %arg8[%c0_18, %c0_19, %c0_20] : memref<1x128x32xbf16, #tpu.memory_space<vmem>>, vector<1x128x32xbf16>
    %14 = vector.shape_cast %13 : vector<1x128x32xbf16> to vector<128x32xbf16>
    %c0_21 = arith.constant 0 : index
    %c0_22 = arith.constant 0 : index
    %c0_23 = arith.constant 0 : index
    %15 = vector.load %arg9[%c0_21, %c0_22, %c0_23] : memref<1x8x128xf32, #tpu.memory_space<vmem>>, vector<1x1x32xf32>
    %16 = vector.shape_cast %15 : vector<1x1x32xf32> to vector<1x32xf32>
    %c0_24 = arith.constant 0 : index
    %c1 = arith.constant 1 : index
    %c0_25 = arith.constant 0 : index
    %17 = vector.load %arg9[%c0_24, %c1, %c0_25] : memref<1x8x128xf32, #tpu.memory_space<vmem>>, vector<1x1x32xf32>
    %18 = vector.shape_cast %17 : vector<1x1x32xf32> to vector<1x32xf32>
    %c0_26 = arith.constant 0 : index
    %c2 = arith.constant 2 : index
    %c0_27 = arith.constant 0 : index
    %19 = vector.load %arg9[%c0_26, %c2, %c0_27] : memref<1x8x128xf32, #tpu.memory_space<vmem>>, vector<1x1x32xf32>
    %20 = vector.shape_cast %19 : vector<1x1x32xf32> to vector<1x32xf32>
    %c0_28 = arith.constant 0 : index
    %c3 = arith.constant 3 : index
    %c0_29 = arith.constant 0 : index
    %21 = vector.load %arg9[%c0_28, %c3, %c0_29] : memref<1x8x128xf32, #tpu.memory_space<vmem>>, vector<1x1x128xf32>
    %22 = vector.shape_cast %21 : vector<1x1x128xf32> to vector<1x128xf32>
    %c0_30 = arith.constant 0 : index
    %c4 = arith.constant 4 : index
    %c0_31 = arith.constant 0 : index
    %23 = vector.load %arg9[%c0_30, %c4, %c0_31] : memref<1x8x128xf32, #tpu.memory_space<vmem>>, vector<1x1x32xf32>
    %24 = vector.shape_cast %23 : vector<1x1x32xf32> to vector<1x32xf32>
    %c0_32 = arith.constant 0 : index
    %c5 = arith.constant 5 : index
    %c0_33 = arith.constant 0 : index
    %25 = vector.load %arg9[%c0_32, %c5, %c0_33] : memref<1x8x128xf32, #tpu.memory_space<vmem>>, vector<1x1x32xf32>
    %26 = vector.shape_cast %25 : vector<1x1x32xf32> to vector<1x32xf32>
    %c0_34 = arith.constant 0 : index
    %c6 = arith.constant 6 : index
    %c0_35 = arith.constant 0 : index
    %27 = vector.load %arg9[%c0_34, %c6, %c0_35] : memref<1x8x128xf32, #tpu.memory_space<vmem>>, vector<1x1x32xf32>
    %28 = vector.shape_cast %27 : vector<1x1x32xf32> to vector<1x32xf32>
    %29 = arith.truncf %4 : vector<8x32xf32> to vector<8x32xbf16>
    %30 = vector.shape_cast %29 : vector<8x32xbf16> to vector<1x8x32xbf16>
    %31 = vector.shape_cast %30 : vector<1x8x32xbf16> to vector<1x8x32xbf16>
    %32 = vector.broadcast %31 : vector<1x8x32xbf16> to vector<4x8x32xbf16>
    "tpu.trace_start"() <{level = 10 : i32, message = "hnd,hdc->hnc"}> : () -> ()
    %cst = arith.constant dense<0.000000e+00> : vector<4x8x24xf32>
    %33 = tpu.matmul %32, %6, %cst {dimension_numbers = #tpu.dot_dimension_numbers<[2], [1], [1], [2], [0, 0, 0, 1, 1, 2], [0], [0]>} : vector<4x8x32xbf16>, vector<4x32x24xbf16>, vector<4x8x24xf32> -> vector<4x8x24xf32>
    "tpu.trace_stop"() : () -> ()
    %34 = vector.broadcast %8 : vector<4x1x24xf32> to vector<4x8x24xf32>
    %35 = arith.addf %33, %34 : vector<4x8x24xf32>
    %36 = vector.extract_strided_slice %35 {offsets = [0, 0, 0], sizes = [4, 8, 8], strides = [1, 1, 1]} : vector<4x8x24xf32> to vector<4x8x8xf32>
    %37 = vector.extract_strided_slice %35 {offsets = [0, 0, 8], sizes = [4, 8, 8], strides = [1, 1, 1]} : vector<4x8x24xf32> to vector<4x8x8xf32>
    %38 = vector.extract_strided_slice %35 {offsets = [0, 0, 16], sizes = [4, 8, 8], strides = [1, 1, 1]} : vector<4x8x24xf32> to vector<4x8x8xf32>
    %c0_36 = arith.constant 0 : index
    %c0_37 = arith.constant 0 : index
    %c0_38 = arith.constant 0 : index
    %39 = vector.load %arg3[%c0_36, %c0_37, %c0_38] : memref<1x1x8xf32, #tpu.memory_space<vmem>>, vector<1x1x8xf32>
    %40 = vector.shape_cast %39 : vector<1x1x8xf32> to vector<1x1x1x8xf32>
    %41 = vector.shape_cast %40 : vector<1x1x1x8xf32> to vector<1x1x1x8xf32>
    %42 = vector.broadcast %41 : vector<1x1x1x8xf32> to vector<4x1x1x8xf32>
    %43 = vector.shape_cast %42 : vector<4x1x1x8xf32> to vector<4x1x8xf32>
    "tpu.trace_start"() <{level = 10 : i32, message = "xqd,xkd->xqk"}> : () -> ()
    %cst_39 = arith.constant dense<0.000000e+00> : vector<4x8x8xf32>
    %44 = tpu.matmul %36, %37, %cst_39 {dimension_numbers = #tpu.dot_dimension_numbers<[2], [2], [1], [1], [0, 0, 0, 1, 1, 1], [0], [0]>} : vector<4x8x8xf32>, vector<4x8x8xf32>, vector<4x8x8xf32> -> vector<4x8x8xf32>
    "tpu.trace_stop"() : () -> ()
    %cst_40 = arith.constant 0.353553385 : f32
    %45 = vector.broadcast %cst_40 : f32 to vector<4x8x8xf32>
    %46 = arith.mulf %44, %45 : vector<4x8x8xf32>
    %47 = vector.broadcast %43 : vector<4x1x8xf32> to vector<4x8x8xf32>
    %48 = arith.addf %46, %47 : vector<4x8x8xf32>
    %cst_41 = arith.constant dense<0xFF800000> : vector<4x8xf32>
    %49 = vector.multi_reduction <maximumf>, %48, %cst_41 [2] : vector<4x8x8xf32> to vector<4x8xf32>
    %50 = vector.shape_cast %49 : vector<4x8xf32> to vector<4x8x1xf32>
    %51 = vector.broadcast %50 : vector<4x8x1xf32> to vector<4x8x8xf32>
    %52 = arith.subf %48, %51 : vector<4x8x8xf32>
    %53 = math.exp %52 : vector<4x8x8xf32>
    %cst_42 = arith.constant dense<0.000000e+00> : vector<4x8xf32>
    %54 = vector.multi_reduction <add>, %53, %cst_42 [2] : vector<4x8x8xf32> to vector<4x8xf32>
    %55 = vector.shape_cast %54 : vector<4x8xf32> to vector<4x8x1xf32>
    %56 = vector.broadcast %55 : vector<4x8x1xf32> to vector<4x8x8xf32>
    %57 = arith.divf %53, %56 : vector<4x8x8xf32>
    "tpu.trace_start"() <{level = 10 : i32, message = "xqk,xkd->xqd"}> : () -> ()
    %cst_43 = arith.constant dense<0.000000e+00> : vector<4x8x8xf32>
    %58 = tpu.matmul %57, %38, %cst_43 {dimension_numbers = #tpu.dot_dimension_numbers<[2], [1], [1], [2], [0, 0, 0, 1, 1, 2], [0], [0]>} : vector<4x8x8xf32>, vector<4x8x8xf32>, vector<4x8x8xf32> -> vector<4x8x8xf32>
    "tpu.trace_stop"() : () -> ()
    %59 = arith.truncf %58 : vector<4x8x8xf32> to vector<4x8x8xbf16>
    "tpu.trace_start"() <{level = 10 : i32, message = "hnv,hvd->hnd"}> : () -> ()
    %cst_44 = arith.constant dense<0.000000e+00> : vector<4x8x32xf32>
    %60 = tpu.matmul %59, %10, %cst_44 {dimension_numbers = #tpu.dot_dimension_numbers<[2], [1], [1], [2], [0, 0, 0, 1, 1, 2], [0], [0]>} : vector<4x8x8xbf16>, vector<4x8x32xbf16>, vector<4x8x32xf32> -> vector<4x8x32xf32>
    "tpu.trace_stop"() : () -> ()
    %cst_45 = arith.constant dense<0.000000e+00> : vector<8x32xf32>
    %61 = vector.multi_reduction <add>, %60, %cst_45 [0] : vector<4x8x32xf32> to vector<8x32xf32>
    %62 = vector.broadcast %16 : vector<1x32xf32> to vector<8x32xf32>
    %63 = arith.addf %61, %62 : vector<8x32xf32>
    %64 = arith.addf %63, %4 : vector<8x32xf32>
    %cst_46 = arith.constant dense<0.000000e+00> : vector<8xf32>
    %65 = vector.multi_reduction <add>, %64, %cst_46 [1] : vector<8x32xf32> to vector<8xf32>
    %66 = vector.shape_cast %65 : vector<8xf32> to vector<8x1xf32>
    %cst_47 = arith.constant 3.200000e+01 : f32
    %67 = vector.broadcast %cst_47 : f32 to vector<8x1xf32>
    %68 = arith.divf %66, %67 : vector<8x1xf32>
    %69 = vector.broadcast %68 : vector<8x1xf32> to vector<8x32xf32>
    %70 = arith.subf %64, %69 : vector<8x32xf32>
    %71 = arith.mulf %70, %70 : vector<8x32xf32>
    %cst_48 = arith.constant dense<0.000000e+00> : vector<8xf32>
    %72 = vector.multi_reduction <add>, %71, %cst_48 [1] : vector<8x32xf32> to vector<8xf32>
    %73 = vector.shape_cast %72 : vector<8xf32> to vector<8x1xf32>
    %cst_49 = arith.constant 3.200000e+01 : f32
    %74 = vector.broadcast %cst_49 : f32 to vector<8x1xf32>
    %75 = arith.divf %73, %74 : vector<8x1xf32>
    %76 = vector.broadcast %68 : vector<8x1xf32> to vector<8x32xf32>
    %77 = arith.subf %64, %76 : vector<8x32xf32>
    %cst_50 = arith.constant 9.99999974E-6 : f32
    %78 = vector.broadcast %cst_50 : f32 to vector<8x1xf32>
    %79 = arith.addf %75, %78 : vector<8x1xf32>
    %80 = math.rsqrt %79 : vector<8x1xf32>
    %81 = vector.broadcast %80 : vector<8x1xf32> to vector<8x32xf32>
    %82 = arith.mulf %77, %81 : vector<8x32xf32>
    %83 = vector.broadcast %18 : vector<1x32xf32> to vector<8x32xf32>
    %84 = arith.mulf %82, %83 : vector<8x32xf32>
    %85 = vector.broadcast %20 : vector<1x32xf32> to vector<8x32xf32>
    %86 = arith.addf %84, %85 : vector<8x32xf32>
    %87 = arith.truncf %86 : vector<8x32xf32> to vector<8x32xbf16>
    %cst_51 = arith.constant dense<0.000000e+00> : vector<8x128xf32>
    %88 = tpu.matmul %87, %12, %cst_51 {dimension_numbers = #tpu.dot_dimension_numbers<[1], [0], [0], [1], [0, 0, 1, 1], [], []>} : vector<8x32xbf16>, vector<32x128xbf16>, vector<8x128xf32> -> vector<8x128xf32>
    %89 = vector.broadcast %22 : vector<1x128xf32> to vector<8x128xf32>
    %90 = arith.addf %88, %89 : vector<8x128xf32>
    %cst_52 = arith.constant 0.000000e+00 : f32
    %91 = vector.broadcast %cst_52 : f32 to vector<8x128xf32>
    %92 = arith.maximumf %90, %91 : vector<8x128xf32>
    %93 = arith.truncf %92 : vector<8x128xf32> to vector<8x128xbf16>
    %cst_53 = arith.constant dense<0.000000e+00> : vector<8x32xf32>
    %94 = tpu.matmul %93, %14, %cst_53 {dimension_numbers = #tpu.dot_dimension_numbers<[1], [0], [0], [1], [0, 0, 1, 1], [], []>} : vector<8x128xbf16>, vector<128x32xbf16>, vector<8x32xf32> -> vector<8x32xf32>
    %95 = vector.broadcast %24 : vector<1x32xf32> to vector<8x32xf32>
    %96 = arith.addf %94, %95 : vector<8x32xf32>
    %97 = arith.addf %96, %86 : vector<8x32xf32>
    %cst_54 = arith.constant dense<0.000000e+00> : vector<8xf32>
    %98 = vector.multi_reduction <add>, %97, %cst_54 [1] : vector<8x32xf32> to vector<8xf32>
    %99 = vector.shape_cast %98 : vector<8xf32> to vector<8x1xf32>
    %cst_55 = arith.constant 3.200000e+01 : f32
    %100 = vector.broadcast %cst_55 : f32 to vector<8x1xf32>
    %101 = arith.divf %99, %100 : vector<8x1xf32>
    %102 = vector.broadcast %101 : vector<8x1xf32> to vector<8x32xf32>
    %103 = arith.subf %97, %102 : vector<8x32xf32>
    %104 = arith.mulf %103, %103 : vector<8x32xf32>
    %cst_56 = arith.constant dense<0.000000e+00> : vector<8xf32>
    %105 = vector.multi_reduction <add>, %104, %cst_56 [1] : vector<8x32xf32> to vector<8xf32>
    %106 = vector.shape_cast %105 : vector<8xf32> to vector<8x1xf32>
    %cst_57 = arith.constant 3.200000e+01 : f32
    %107 = vector.broadcast %cst_57 : f32 to vector<8x1xf32>
    %108 = arith.divf %106, %107 : vector<8x1xf32>
    %109 = vector.broadcast %101 : vector<8x1xf32> to vector<8x32xf32>
    %110 = arith.subf %97, %109 : vector<8x32xf32>
    %cst_58 = arith.constant 9.99999974E-6 : f32
    %111 = vector.broadcast %cst_58 : f32 to vector<8x1xf32>
    %112 = arith.addf %108, %111 : vector<8x1xf32>
    %113 = math.rsqrt %112 : vector<8x1xf32>
    %114 = vector.broadcast %113 : vector<8x1xf32> to vector<8x32xf32>
    %115 = arith.mulf %110, %114 : vector<8x32xf32>
    %116 = vector.broadcast %26 : vector<1x32xf32> to vector<8x32xf32>
    %117 = arith.mulf %115, %116 : vector<8x32xf32>
    %118 = vector.broadcast %28 : vector<1x32xf32> to vector<8x32xf32>
    %119 = arith.addf %117, %118 : vector<8x32xf32>
    %120 = vector.shape_cast %119 : vector<8x32xf32> to vector<1x8x32xf32>
    %c0_59 = arith.constant 0 : index
    %c0_60 = arith.constant 0 : index
    %c0_61 = arith.constant 0 : index
    %121 = vector.load %arg10[%c0_59, %c0_60, %c0_61] : memref<1x8x32xf32, #tpu.memory_space<vmem>>, vector<1x8x32xf32>
    tpu.vector_store %arg10[%c0_59, %c0_60, %c0_61], %120 {strides = array<i32>} : memref<1x8x32xf32, #tpu.memory_space<vmem>>, vector<1x8x32xf32>,
    %122 = vector.shape_cast %57 : vector<4x8x8xf32> to vector<1x4x1x8x8xf32>
    %123 = arith.truncf %122 : vector<1x4x1x8x8xf32> to vector<1x4x1x8x8xbf16>
    %c0_62 = arith.constant 0 : index
    %c0_63 = arith.constant 0 : index
    %c0_64 = arith.constant 0 : index
    %c0_65 = arith.constant 0 : index
    %c0_66 = arith.constant 0 : index
    %124 = vector.load %arg11[%c0_62, %c0_63, %c0_64, %c0_65, %c0_66] : memref<1x4x1x8x8xbf16, #tpu.memory_space<vmem>>, vector<1x4x1x8x8xbf16>
    tpu.vector_store %arg11[%c0_62, %c0_63, %c0_64, %c0_65, %c0_66], %123 {strides = array<i32>} : memref<1x4x1x8x8xbf16, #tpu.memory_space<vmem>>, vector<1x4x1x8x8xbf16>,
    return
  }
  func.func @transform_0(%arg0: i32, %arg1: i32) -> (i32, i32, i32) {
    %c0_i32 = arith.constant 0 : i32
    %c0_i32_0 = arith.constant 0 : i32
    %c0_i32_1 = arith.constant 0 : i32
    return %arg0, %c0_i32, %c0_i32_0 : i32, i32, i32
  }
  func.func @transform_1(%arg0: i32, %arg1: i32) -> (i32, i32, i32) {
    %c0_i32 = arith.constant 0 : i32
    %c0_i32_0 = arith.constant 0 : i32
    %c0_i32_1 = arith.constant 0 : i32
    return %arg0, %c0_i32, %c0_i32_0 : i32, i32, i32
  }
  func.func @transform_2(%arg0: i32, %arg1: i32) -> (i32, i32, i32, i32) {
    %c0_i32 = arith.constant 0 : i32
    %c0_i32_0 = arith.constant 0 : i32
    %c0_i32_1 = arith.constant 0 : i32
    %c0_i32_2 = arith.constant 0 : i32
    return %arg1, %c0_i32, %c0_i32_0, %c0_i32_1 : i32, i32, i32, i32
  }
  func.func @transform_3(%arg0: i32, %arg1: i32) -> (i32, i32, i32, i32) {
    %c0_i32 = arith.constant 0 : i32
    %c0_i32_0 = arith.constant 0 : i32
    %c0_i32_1 = arith.constant 0 : i32
    %c0_i32_2 = arith.constant 0 : i32
    return %arg1, %c0_i32, %c0_i32_0, %c0_i32_1 : i32, i32, i32, i32
  }
  func.func @transform_4(%arg0: i32, %arg1: i32) -> (i32, i32, i32, i32) {
    %c0_i32 = arith.constant 0 : i32
    %c0_i32_0 = arith.constant 0 : i32
    %c0_i32_1 = arith.constant 0 : i32
    %c0_i32_2 = arith.constant 0 : i32
    return %arg1, %c0_i32, %c0_i32_0, %c0_i32_1 : i32, i32, i32, i32
  }
  func.func @transform_5(%arg0: i32, %arg1: i32) -> (i32, i32, i32) {
    %c0_i32 = arith.constant 0 : i32
    %c0_i32_0 = arith.constant 0 : i32
    %c0_i32_1 = arith.constant 0 : i32
    return %arg1, %c0_i32, %c0_i32_0 : i32, i32, i32
  }
  func.func @transform_6(%arg0: i32, %arg1: i32) -> (i32, i32, i32) {
    %c0_i32 = arith.constant 0 : i32
    %c0_i32_0 = arith.constant 0 : i32
    %c0_i32_1 = arith.constant 0 : i32
    return %arg1, %c0_i32, %c0_i32_0 : i32, i32, i32
  }
  func.func @transform_7(%arg0: i32, %arg1: i32) -> (i32, i32, i32) {
    %c0_i32 = arith.constant 0 : i32
    %c0_i32_0 = arith.constant 0 : i32
    %c0_i32_1 = arith.constant 0 : i32
    return %arg1, %c0_i32, %c0_i32_0 : i32, i32, i32
  }
  func.func @transform_8(%arg0: i32, %arg1: i32) -> (i32, i32, i32) {
    %c0_i32 = arith.constant 0 : i32
    %c0_i32_0 = arith.constant 0 : i32
    %c0_i32_1 = arith.constant 0 : i32
    return %arg0, %c0_i32, %c0_i32_0 : i32, i32, i32
  }
  func.func @transform_9(%arg0: i32, %arg1: i32) -> (i32, i32, i32, i32, i32) {
    %c0_i32 = arith.constant 0 : i32
    %c0_i32_0 = arith.constant 0 : i32
    %c0_i32_1 = arith.constant 0 : i32
    %c0_i32_2 = arith.constant 0 : i32
    return %arg1, %c0_i32, %arg0, %c0_i32_0, %c0_i32_1 : i32, i32, i32, i32, i32
  }
}

</mosaic_0001>

<llo_original>
// kernel: encoder_forward.1
$region0: #{encoder_forward.1}
  #allocation0 [shape = 'u32[]', space=smem, size = 0x4, offset = 0x4, fixed_abs, tag = 'smem constant byte address 0x4 - core index']
  #allocation1 [shape = 'u32[144,128]{1,0:T(1,128)}', space=vmem, size = 0x12000, scoped, tag = 'internal scratch']
  %s0 = inlined_call_operand.vmem [shape: f32[2,8,32], index: 0, kind: input, shape index: {}]
  %s1 = inlined_call_operand.vmem [shape: f32[2,1,8], index: 1, kind: input, shape index: {}]
  %s2 = inlined_call_operand.vmem [shape: bf16[2,4,32,24], index: 2, kind: input, shape index: {}]
  %s3 = inlined_call_operand.vmem [shape: f32[2,4,1,24], index: 3, kind: input, shape index: {}]
  %s4 = inlined_call_operand.vmem [shape: bf16[2,4,8,32], index: 4, kind: input, shape index: {}]
  %s5 = inlined_call_operand.vmem [shape: bf16[2,32,128], index: 5, kind: input, shape index: {}]
  %s6 = inlined_call_operand.vmem [shape: bf16[2,128,32], index: 6, kind: input, shape index: {}]
  %s7 = inlined_call_operand.vmem [shape: f32[2,8,128], index: 7, kind: input, shape index: {}]
  %s8 = inlined_call_operand.hbm [shape: f32[2,8,32], index: 8, kind: output, shape index: {0}]
  %s9 = inlined_call_operand.vmem [shape: bf16[2,4,2,8,8], index: 9, kind: output, shape index: {1}]
  %10 = xla_tuple %s8, %s9
  %s11 = sld [smem:[#allocation0]]
  $region114: #{encoder_forward.1} parent=0
    _
  %s13 = ssub.s32 1, %s11
  %s14 = scalar_select 0, %s13, %s11
  $region1: #{encoder_forward.1} parent=0
    #allocation2 [shape = 'u8[8192]{0}', space=vmem, size = 0x2000, scoped, tag = 'output window, operand 0']
    #allocation3 [shape = 's32[2]{0}', space=sflag, size = 0x8, scoped, tag = 'scoped memory for encoder_forward.1']
    #allocation4 [shape = 'u8[16384]{0}', space=vmem, size = 0x4000, scoped, tag = 'output window, operand 1']
    %15 = vsyncpa [#allocation3], 0
    %s16 = scalar_lea.sflag [#allocation3], 1
    %17 = vsyncpa %s16, 0
    loop: start=0, step=1, limit=6
    $region2: #{encoder_forward.1} parent=1 // loop_pre_header
      _
    $region3: #{encoder_forward.1} parent=1 // loop_header
      %s19 = sphi 0, %s23
      %p20 = scmp.ge.s32.totalorder %s19, 6
      %s26 = sphi 0, %s38
      %s27 = sphi 0, %s34
      %s28 = sphi 0, %s26
      %s29 = sphi 0, %s27
      %s30 = sphi 0, %s28
      %s31 = sphi 0, %s29
      %s41 = sphi 0, %s43
      %s44 = sphi 0, %s41
      %s45 = sphi 0, %s44
      %s61 = sphi 0, %s45
      %s67 = sphi 0, %s69
      %s70 = sphi 0, %s67
      %s71 = sphi 0, %s70
      %s87 = sphi 0, %s71
      %s93 = sphi 0, %s95
      %s96 = sphi 0, %s93
      %s97 = sphi 0, %s96
      %s113 = sphi 0, %s97
      %s119 = sphi 0, %s121
      %s122 = sphi 0, %s119
      %s123 = sphi 0, %s122
      %s139 = sphi 0, %s123
      %s145 = sphi 0, %s147
      %s148 = sphi 0, %s145
      %s149 = sphi 0, %s148
      %s165 = sphi 0, %s149
      %s171 = sphi 0, %s173
      %s174 = sphi 0, %s171
      %s175 = sphi 0, %s174
      %s191 = sphi 0, %s175
      %s197 = sphi 0, %s199
      %s200 = sphi 0, %s197
      %s201 = sphi 0, %s200
      %s217 = sphi 0, %s201
      %s223 = sphi 0, %s225
      %s226 = sphi 0, %s223
      %s227 = sphi 0, %s226
      %s243 = sphi 0, %s227
      %s249 = sphi 0, %s251
      %s252 = sphi 0, %s249
      %s253 = sphi 0, %s252
      %s269 = sphi 0, %s253
      %s277 = sphi 0, %s279
      %s280 = sphi 0, %s277
      %s281 = sphi 0, %s280
      %s297 = sphi 0, %s281
    $region4: #{encoder_forward.1} parent=1 // loop_header_branch
      %22 = sbr.rel (%p20) target = $region8
    $region5: #{encoder_forward.1} parent=1 // loop_body
      %s24 = ssub.s32 %s19, 1
      %s25 = ssub.s32 %s19, 2
      %s32 = sadd.s32 1, %s27
      %p33 = scmp.ge.s32.totalorder %s32, 2
      %s34 = scalar_select %p33, 0, %s32
      %s35 = sadd.s32 1, %s26
      %s36 = scalar_select %p33, %s35, %s26
      %p37 = scmp.ge.s32.totalorder %s36, 2
      %s38 = scalar_select %p37, 0, %s36
      %s39 = ssub.s32 %s26, %s38
      %p40 = scmp.eq.s32.totalorder %s39, 0
      %s42 = sadd.s32 %s41, 1
      %s43 = scalar_select %p40, %s41, %s42
      %p46 = pneg %p40
      %p47 = scmp.eq.s32.totalorder %s19, 3
      %p48 = por %p46, %p47
      %p49 = scmp.ne.s32.totalorder %s41, %s44
      %p50 = scmp.eq.s32.totalorder %s19, 0
      %p51 = por %p49, %p50
      %p52 = scmp.ne.s32.totalorder %s41, %s44
      %p53 = scmp.eq.s32.totalorder %s24, 3
      %p54 = por %p52, %p53
      %p55 = scmp.ne.s32.totalorder %s44, %s45
      %p56 = scmp.eq.s32.totalorder %s24, 0
      %p57 = por %p55, %p56
      %p58 = scmp.ne.s32.totalorder %s44, %s45
      %p59 = scmp.eq.s32.totalorder %s25, 3
      %p60 = por %p58, %p59
      %p62 = scmp.ne.s32.totalorder %s45, %s61
      %p63 = scmp.eq.s32.totalorder %s25, 0
      %p64 = por %p62, %p63
      %s65 = ssub.s32 %s26, %s38
      %p66 = scmp.eq.s32.totalorder %s65, 0
      %s68 = sadd.s32 %s67, 1
      %s69 = scalar_select %p66, %s67, %s68
      %p72 = pneg %p66
      %p73 = scmp.eq.s32.totalorder %s19, 3
      %p74 = por %p72, %p73
      %p75 = scmp.ne.s32.totalorder %s67, %s70
      %p76 = scmp.eq.s32.totalorder %s19, 0
      %p77 = por %p75, %p76
      %p78 = scmp.ne.s32.totalorder %s67, %s70
      %p79 = scmp.eq.s32.totalorder %s24, 3
      %p80 = por %p78, %p79
      %p81 = scmp.ne.s32.totalorder %s70, %s71
      %p82 = scmp.eq.s32.totalorder %s24, 0
      %p83 = por %p81, %p82
      %p84 = scmp.ne.s32.totalorder %s70, %s71
      %p85 = scmp.eq.s32.totalorder %s25, 3
      %p86 = por %p84, %p85
      %p88 = scmp.ne.s32.totalorder %s71, %s87
      %p89 = scmp.eq.s32.totalorder %s25, 0
      %p90 = por %p88, %p89
      %s91 = ssub.s32 %s27, %s34
      %p92 = scmp.eq.s32.totalorder %s91, 0
      %s94 = sadd.s32 %s93, 1
      %s95 = scalar_select %p92, %s93, %s94
      %p98 = pneg %p92
      %p99 = scmp.eq.s32.totalorder %s19, 3
      %p100 = por %p98, %p99
      %p101 = scmp.ne.s32.totalorder %s93, %s96
      %p102 = scmp.eq.s32.totalorder %s19, 0
      %p103 = por %p101, %p102
      %p104 = scmp.ne.s32.totalorder %s93, %s96
      %p105 = scmp.eq.s32.totalorder %s24, 3
      %p106 = por %p104, %p105
      %p107 = scmp.ne.s32.totalorder %s96, %s97
      %p108 = scmp.eq.s32.totalorder %s24, 0
      %p109 = por %p107, %p108
      %p110 = scmp.ne.s32.totalorder %s96, %s97
      %p111 = scmp.eq.s32.totalorder %s25, 3
      %p112 = por %p110, %p111
      %p114 = scmp.ne.s32.totalorder %s97, %s113
      %p115 = scmp.eq.s32.totalorder %s25, 0
      %p116 = por %p114, %p115
      %s117 = ssub.s32 %s27, %s34
      %p118 = scmp.eq.s32.totalorder %s117, 0
      %s120 = sadd.s32 %s119, 1
      %s121 = scalar_select %p118, %s119, %s120
      %p124 = pneg %p118
      %p125 = scmp.eq.s32.totalorder %s19, 3
      %p126 = por %p124, %p125
      %p127 = scmp.ne.s32.totalorder %s119, %s122
      %p128 = scmp.eq.s32.totalorder %s19, 0
      %p129 = por %p127, %p128
      %p130 = scmp.ne.s32.totalorder %s119, %s122
      %p131 = scmp.eq.s32.totalorder %s24, 3
      %p132 = por %p130, %p131
      %p133 = scmp.ne.s32.totalorder %s122, %s123
      %p134 = scmp.eq.s32.totalorder %s24, 0
      %p135 = por %p133, %p134
      %p136 = scmp.ne.s32.totalorder %s122, %s123
      %p137 = scmp.eq.s32.totalorder %s25, 3
      %p138 = por %p136, %p137
      %p140 = scmp.ne.s32.totalorder %s123, %s139
      %p141 = scmp.eq.s32.totalorder %s25, 0
      %p142 = por %p140, %p141
      %s143 = ssub.s32 %s27, %s34
      %p144 = scmp.eq.s32.totalorder %s143, 0
      %s146 = sadd.s32 %s145, 1
      %s147 = scalar_select %p144, %s145, %s146
      %p150 = pneg %p144
      %p151 = scmp.eq.s32.totalorder %s19, 3
      %p152 = por %p150, %p151
      %p153 = scmp.ne.s32.totalorder %s145, %s148
      %p154 = scmp.eq.s32.totalorder %s19, 0
      %p155 = por %p153, %p154
      %p156 = scmp.ne.s32.totalorder %s145, %s148
      %p157 = scmp.eq.s32.totalorder %s24, 3
      %p158 = por %p156, %p157
      %p159 = scmp.ne.s32.totalorder %s148, %s149
      %p160 = scmp.eq.s32.totalorder %s24, 0
      %p161 = por %p159, %p160
      %p162 = scmp.ne.s32.totalorder %s148, %s149
      %p163 = scmp.eq.s32.totalorder %s25, 3
      %p164 = por %p162, %p163
      %p166 = scmp.ne.s32.totalorder %s149, %s165
      %p167 = scmp.eq.s32.totalorder %s25, 0
      %p168 = por %p166, %p167
      %s169 = ssub.s32 %s27, %s34
      %p170 = scmp.eq.s32.totalorder %s169, 0
      %s172 = sadd.s32 %s171, 1
      %s173 = scalar_select %p170, %s171, %s172
      %p176 = pneg %p170
      %p177 = scmp.eq.s32.totalorder %s19, 3
      %p178 = por %p176, %p177
      %p179 = scmp.ne.s32.totalorder %s171, %s174
      %p180 = scmp.eq.s32.totalorder %s19, 0
      %p181 = por %p179, %p180
      %p182 = scmp.ne.s32.totalorder %s171, %s174
      %p183 = scmp.eq.s32.totalorder %s24, 3
      %p184 = por %p182, %p183
      %p185 = scmp.ne.s32.totalorder %s174, %s175
      %p186 = scmp.eq.s32.totalorder %s24, 0
      %p187 = por %p185, %p186
      %p188 = scmp.ne.s32.totalorder %s174, %s175
      %p189 = scmp.eq.s32.totalorder %s25, 3
      %p190 = por %p188, %p189
      %p192 = scmp.ne.s32.totalorder %s175, %s191
      %p193 = scmp.eq.s32.totalorder %s25, 0
      %p194 = por %p192, %p193
      %s195 = ssub.s32 %s27, %s34
      %p196 = scmp.eq.s32.totalorder %s195, 0
      %s198 = sadd.s32 %s197, 1
      %s199 = scalar_select %p196, %s197, %s198
      %p202 = pneg %p196
      %p203 = scmp.eq.s32.totalorder %s19, 3
      %p204 = por %p202, %p203
      %p205 = scmp.ne.s32.totalorder %s197, %s200
      %p206 = scmp.eq.s32.totalorder %s19, 0
      %p207 = por %p205, %p206
      %p208 = scmp.ne.s32.totalorder %s197, %s200
      %p209 = scmp.eq.s32.totalorder %s24, 3
      %p210 = por %p208, %p209
      %p211 = scmp.ne.s32.totalorder %s200, %s201
      %p212 = scmp.eq.s32.totalorder %s24, 0
      %p213 = por %p211, %p212
      %p214 = scmp.ne.s32.totalorder %s200, %s201
      %p215 = scmp.eq.s32.totalorder %s25, 3
      %p216 = por %p214, %p215
      %p218 = scmp.ne.s32.totalorder %s201, %s217
      %p219 = scmp.eq.s32.totalorder %s25, 0
      %p220 = por %p218, %p219
      %s221 = ssub.s32 %s27, %s34
      %p222 = scmp.eq.s32.totalorder %s221, 0
      %s224 = sadd.s32 %s223, 1
      %s225 = scalar_select %p222, %s223, %s224
      %p228 = pneg %p222
      %p229 = scmp.eq.s32.totalorder %s19, 3
      %p230 = por %p228, %p229
      %p231 = scmp.ne.s32.totalorder %s223, %s226
      %p232 = scmp.eq.s32.totalorder %s19, 0
      %p233 = por %p231, %p232
      %p234 = scmp.ne.s32.totalorder %s223, %s226
      %p235 = scmp.eq.s32.totalorder %s24, 3
      %p236 = por %p234, %p235
      %p237 = scmp.ne.s32.totalorder %s226, %s227
      %p238 = scmp.eq.s32.totalorder %s24, 0
      %p239 = por %p237, %p238
      %p240 = scmp.ne.s32.totalorder %s226, %s227
      %p241 = scmp.eq.s32.totalorder %s25, 3
      %p242 = por %p240, %p241
      %p244 = scmp.ne.s32.totalorder %s227, %s243
      %p245 = scmp.eq.s32.totalorder %s25, 0
      %p246 = por %p244, %p245
      %s247 = ssub.s32 %s26, %s38
      %p248 = scmp.eq.s32.totalorder %s247, 0
      %s250 = sadd.s32 %s249, 1
      %s251 = scalar_select %p248, %s249, %s250
      %p254 = pneg %p248
      %p255 = scmp.eq.s32.totalorder %s19, 3
      %p256 = por %p254, %p255
      %p257 = scmp.ne.s32.totalorder %s249, %s252
      %p258 = scmp.eq.s32.totalorder %s19, 0
      %p259 = por %p257, %p258
      %p260 = scmp.ne.s32.totalorder %s249, %s252
      %p261 = scmp.eq.s32.totalorder %s24, 3
      %p262 = por %p260, %p261
      %p263 = scmp.ne.s32.totalorder %s252, %s253
      %p264 = scmp.eq.s32.totalorder %s24, 0
      %p265 = por %p263, %p264
      %p266 = scmp.ne.s32.totalorder %s252, %s253
      %p267 = scmp.eq.s32.totalorder %s25, 3
      %p268 = por %p266, %p267
      %p270 = scmp.ne.s32.totalorder %s253, %s269
      %p271 = scmp.eq.s32.totalorder %s25, 0
      %p272 = por %p270, %p271
      %s273 = ssub.s32 %s27, %s34
      %s274 = ssub.s32 %s26, %s38
      %s275 = sor.u32 %s273, %s274
      %p276 = scmp.eq.s32.totalorder %s275, 0
      %s278 = sadd.s32 %s277, 1
      %s279 = scalar_select %p276, %s277, %s278
      %p282 = pneg %p276
      %p283 = scmp.eq.s32.totalorder %s19, 3
      %p284 = por %p282, %p283
      %p285 = scmp.ne.s32.totalorder %s277, %s280
      %p286 = scmp.eq.s32.totalorder %s19, 0
      %p287 = por %p285, %p286
      %p288 = scmp.ne.s32.totalorder %s277, %s280
      %p289 = scmp.eq.s32.totalorder %s24, 3
      %p290 = por %p288, %p289
      %p291 = scmp.ne.s32.totalorder %s280, %s281
      %p292 = scmp.eq.s32.totalorder %s24, 0
      %p293 = por %p291, %p292
      %p294 = scmp.ne.s32.totalorder %s280, %s281
      %p295 = scmp.eq.s32.totalorder %s25, 3
      %p296 = por %p294, %p295
      %p298 = scmp.ne.s32.totalorder %s281, %s297
      %p299 = scmp.eq.s32.totalorder %s25, 0
      %p300 = por %p298, %p299
      %p301 = scmp.le.s32.totalorder 1, %s19
      %p302 = scmp.lt.s32.totalorder %s19, 5
      %p303 = pnand %p301, %p302
      %p304 = pneg %p303
      // Predicated region
      $region9: #{encoder_forward.1} parent=5 // pred_check
        _
      $region10: #{encoder_forward.1} parent=5 // pred_check_branch
        %306 = sbr.rel (%p303) target = $region12
      $region11: #{encoder_forward.1} parent=5 // pred_region
        %s307 = ssub.s32 %s19, 1
      $region12: #{encoder_forward.1} parent=5 // pred_fallthru
        _
      %p308 = scmp.lt.s32.totalorder %s19, 4
      // Predicated region
      $region13: #{encoder_forward.1} parent=5 // pred_check
        %p309 = pneg %p308
      $region14: #{encoder_forward.1} parent=5 // pred_check_branch
        %311 = sbr.rel (%p309) target = $region16
      $region15: #{encoder_forward.1} parent=5 // pred_region
        // Predicated region
        $region17: #{encoder_forward.1} parent=15 // pred_check
          %p312 = pneg %p51
        $region18: #{encoder_forward.1} parent=15 // pred_check_branch
          %314 = sbr.rel (%p312) target = $region20
        $region19: #{encoder_forward.1} parent=15 // pred_region
          %p315 = scmp.lt.s32.totalorder %s26, 1
          %s316 = scalar_select %p315, %s26, 1
          %s317 = smul.addr %s316, 8
          %s318 = scalar_lea.vmem %s0, %s317
        $region20: #{encoder_forward.1} parent=15 // pred_fallthru
          _
        // Predicated region
        $region21: #{encoder_forward.1} parent=15 // pred_check
          %p319 = pneg %p77
        $region22: #{encoder_forward.1} parent=15 // pred_check_branch
          %321 = sbr.rel (%p319) target = $region24
        $region23: #{encoder_forward.1} parent=15 // pred_region
          %p322 = scmp.lt.s32.totalorder %s26, 1
          %s323 = scalar_select %p322, %s26, 1
          %s324 = scalar_lea.vmem %s1, %s323
        $region24: #{encoder_forward.1} parent=15 // pred_fallthru
          _
        // Predicated region
        $region25: #{encoder_forward.1} parent=15 // pred_check
          %p325 = pneg %p103
        $region26: #{encoder_forward.1} parent=15 // pred_check_branch
          %327 = sbr.rel (%p325) target = $region28
        $region27: #{encoder_forward.1} parent=15 // pred_region
          %p328 = scmp.lt.s32.totalorder %s27, 1
          %s329 = scalar_select %p328, %s27, 1
          %s330 = smul.addr %s329, 16
          %s331 = smul.addr %s330, 4
          %s332 = scalar_lea.vmem %s2, %s331
        $region28: #{encoder_forward.1} parent=15 // pred_fallthru
          _
        // Predicated region
        $region29: #{encoder_forward.1} parent=15 // pred_check
          %p333 = pneg %p129
        $region30: #{encoder_forward.1} parent=15 // pred_check_branch
          %335 = sbr.rel (%p333) target = $region32
        $region31: #{encoder_forward.1} parent=15 // pred_region
          %p336 = scmp.lt.s32.totalorder %s27, 1
          %s337 = scalar_select %p336, %s27, 1
          %s338 = smul.addr %s337, 4
          %s339 = scalar_lea.vmem %s3, %s338
        $region32: #{encoder_forward.1} parent=15 // pred_fallthru
          _
        // Predicated region
        $region33: #{encoder_forward.1} parent=15 // pred_check
          %p340 = pneg %p155
        $region34: #{encoder_forward.1} parent=15 // pred_check_branch
          %342 = sbr.rel (%p340) target = $region36
        $region35: #{encoder_forward.1} parent=15 // pred_region
          %p343 = scmp.lt.s32.totalorder %s27, 1
          %s344 = scalar_select %p343, %s27, 1
          %s345 = smul.addr %s344, 4
          %s346 = smul.addr %s345, 4
          %s347 = scalar_lea.vmem %s4, %s346
        $region36: #{encoder_forward.1} parent=15 // pred_fallthru
          _
        // Predicated region
        $region37: #{encoder_forward.1} parent=15 // pred_check
          %p348 = pneg %p181
        $region38: #{encoder_forward.1} parent=15 // pred_check_branch
          %350 = sbr.rel (%p348) target = $region40
        $region39: #{encoder_forward.1} parent=15 // pred_region
          %p351 = scmp.lt.s32.totalorder %s27, 1
          %s352 = scalar_select %p351, %s27, 1
          %s353 = smul.addr %s352, 4
          %s354 = smul.addr %s353, 4
          %s355 = scalar_lea.vmem %s5, %s354
        $region40: #{encoder_forward.1} parent=15 // pred_fallthru
          _
        // Predicated region
        $region41: #{encoder_forward.1} parent=15 // pred_check
          %p356 = pneg %p207
        $region42: #{encoder_forward.1} parent=15 // pred_check_branch
          %358 = sbr.rel (%p356) target = $region44
        $region43: #{encoder_forward.1} parent=15 // pred_region
          %p359 = scmp.lt.s32.totalorder %s27, 1
          %s360 = scalar_select %p359, %s27, 1
          %s361 = smul.addr %s360, 16
          %s362 = smul.addr %s361, 4
          %s363 = scalar_lea.vmem %s6, %s362
        $region44: #{encoder_forward.1} parent=15 // pred_fallthru
          _
        // Predicated region
        $region45: #{encoder_forward.1} parent=15 // pred_check
          %p364 = pneg %p233
        $region46: #{encoder_forward.1} parent=15 // pred_check_branch
          %366 = sbr.rel (%p364) target = $region48
        $region47: #{encoder_forward.1} parent=15 // pred_region
          %p367 = scmp.lt.s32.totalorder %s27, 1
          %s368 = scalar_select %p367, %s27, 1
          %s369 = smul.addr %s368, 8
          %s370 = scalar_lea.vmem %s7, %s369
        $region48: #{encoder_forward.1} parent=15 // pred_fallthru
          _
      $region16: #{encoder_forward.1} parent=5 // pred_fallthru
        _
      %p371 = scmp.le.s32.totalorder 1, %s19
      %p372 = scmp.lt.s32.totalorder %s19, 5
      %p373 = pnand %p371, %p372
      %p374 = pneg %p373
      // Predicated region
      $region49: #{encoder_forward.1} parent=5 // pred_check
        _
      $region50: #{encoder_forward.1} parent=5 // pred_check_branch
        %376 = sbr.rel (%p373) target = $region52
      $region51: #{encoder_forward.1} parent=5 // pred_region
        %s377 = ssub.s32 %s19, 1
        %p378 = scmp.lt.s32.totalorder %s28, 1
        %s379 = scalar_select %p378, %s28, 1
        %s380 = smul.addr %s379, 8
        %s381 = scalar_lea.vmem %s0, %s380
        %p382 = pneg %p57
        %p383 = pneg %p54
        %p384 = scmp.lt.s32.totalorder %s28, 1
        %s385 = scalar_select %p384, %s28, 1
        %s386 = scalar_lea.vmem %s1, %s385
        %p387 = pneg %p83
        %p388 = pneg %p80
        %p389 = scmp.lt.s32.totalorder %s29, 1
        %s390 = scalar_select %p389, %s29, 1
        %s391 = smul.addr %s390, 16
        %s392 = smul.addr %s391, 4
        %s393 = scalar_lea.vmem %s2, %s392
        %p394 = pneg %p109
        %p395 = pneg %p106
        %p396 = scmp.lt.s32.totalorder %s29, 1
        %s397 = scalar_select %p396, %s29, 1
        %s398 = smul.addr %s397, 4
        %s399 = scalar_lea.vmem %s3, %s398
        %p400 = pneg %p135
        %p401 = pneg %p132
        %p402 = scmp.lt.s32.totalorder %s29, 1
        %s403 = scalar_select %p402, %s29, 1
        %s404 = smul.addr %s403, 4
        %s405 = smul.addr %s404, 4
        %s406 = scalar_lea.vmem %s4, %s405
        %p407 = pneg %p161
        %p408 = pneg %p158
        %p409 = scmp.lt.s32.totalorder %s29, 1
        %s410 = scalar_select %p409, %s29, 1
        %s411 = smul.addr %s410, 4
        %s412 = smul.addr %s411, 4
        %s413 = scalar_lea.vmem %s5, %s412
        %p414 = pneg %p187
        %p415 = pneg %p184
        %p416 = scmp.lt.s32.totalorder %s29, 1
        %s417 = scalar_select %p416, %s29, 1
        %s418 = smul.addr %s417, 16
        %s419 = smul.addr %s418, 4
        %s420 = scalar_lea.vmem %s6, %s419
        %p421 = pneg %p213
        %p422 = pneg %p210
        %p423 = scmp.lt.s32.totalorder %s29, 1
        %s424 = scalar_select %p423, %s29, 1
        %s425 = smul.addr %s424, 8
        %s426 = scalar_lea.vmem %s7, %s425
        %p427 = pneg %p239
        %p428 = pneg %p236
        %p429 = pneg %p265
        %p430 = pneg %p262
        %s431 = sand.u32 %s252, 1
        %s432 = scalar_lea.sflag [#allocation3], %s431
        %s433 = sand.u32 %s252, 1
        %s434 = smul.addr %s433, 8
        %s435 = scalar_lea.vmem [#allocation2], %s434
        %p436 = pneg %p293
        %p437 = pneg %p290
        %s438 = sand.u32 %s280, 1
        %s439 = sand.u32 %s280, 1
        %s440 = smul.addr %s439, 16
        %s441 = scalar_lea.vmem [#allocation4], %s440
        %p442 = scmp.lt.s32.totalorder %s28, 1
        %s443 = scalar_select %p442, %s28, 1
        %s444 = smul.addr %s443, 8
        %s445 = scalar_lea.vmem %s0, %s444
        %p446 = scmp.lt.s32.totalorder %s28, 1
        %s447 = scalar_select %p446, %s28, 1
        %s448 = scalar_lea.vmem %s1, %s447
        %p449 = scmp.lt.s32.totalorder %s29, 1
        %s450 = scalar_select %p449, %s29, 1
        %s451 = smul.addr %s450, 16
        %s452 = smul.addr %s451, 4
        %s453 = scalar_lea.vmem %s2, %s452
        %p454 = scmp.lt.s32.totalorder %s29, 1
        %s455 = scalar_select %p454, %s29, 1
        %s456 = smul.addr %s455, 4
        %s457 = scalar_lea.vmem %s3, %s456
        %p458 = scmp.lt.s32.totalorder %s29, 1
        %s459 = scalar_select %p458, %s29, 1
        %s460 = smul.addr %s459, 4
        %s461 = smul.addr %s460, 4
        %s462 = scalar_lea.vmem %s4, %s461
        %p463 = scmp.lt.s32.totalorder %s29, 1
        %s464 = scalar_select %p463, %s29, 1
        %s465 = smul.addr %s464, 4
        %s466 = smul.addr %s465, 4
        %s467 = scalar_lea.vmem %s5, %s466
        %p468 = scmp.lt.s32.totalorder %s29, 1
        %s469 = scalar_select %p468, %s29, 1
        %s470 = smul.addr %s469, 16
        %s471 = smul.addr %s470, 4
        %s472 = scalar_lea.vmem %s6, %s471
        %p473 = scmp.lt.s32.totalorder %s29, 1
        %s474 = scalar_select %p473, %s29, 1
        %s475 = smul.addr %s474, 8
        %s476 = scalar_lea.vmem %s7, %s475
        %p478 = scmp.eq.s32.totalorder %s29, 0
        // Predicated region
        $region53: #{encoder_forward.1} parent=51 // pred_check
          %p479 = pneg %p478
        $region54: #{encoder_forward.1} parent=51 // pred_check_branch
          %481 = sbr.rel (%p479) target = $region56
        $region55: #{encoder_forward.1} parent=51 // pred_region
          %v482 = vld [vmem:[%s445] sm:$0xff]
          %vm483 = vcmask 261120
          %484 = vst.msk [vmem:[%s435] sm:$0xff] %vm483, %v482
        $region56: #{encoder_forward.1} parent=51 // pred_fallthru
          _
        %v485 = vld [vmem:[%s435] sm:$0xff]
        %v486 = vld [vmem:[%s453] sm:$0xf]
        %v487 = vld [vmem:[%s453 + $0x4] sm:$0xf]
        %v488 = vld [vmem:[%s453 + $0x8] sm:$0xf]
        %v489 = vld [vmem:[%s453 + $0xc] sm:$0xf]
        %v490 = vld [vmem:[%s453 + $0x10] sm:$0xf]
        %v491 = vld [vmem:[%s453 + $0x14] sm:$0xf]
        %v492 = vld [vmem:[%s453 + $0x18] sm:$0xf]
        %v493 = vld [vmem:[%s453 + $0x1c] sm:$0xf]
        %v494 = vld [vmem:[%s453 + $0x20] sm:$0xf]
        %v495 = vld [vmem:[%s453 + $0x24] sm:$0xf]
        %v496 = vld [vmem:[%s453 + $0x28] sm:$0xf]
        %v497 = vld [vmem:[%s453 + $0x2c] sm:$0xf]
        %v498 = vld [vmem:[%s453 + $0x30] sm:$0xf]
        %v499 = vld [vmem:[%s453 + $0x34] sm:$0xf]
        %v500 = vld [vmem:[%s453 + $0x38] sm:$0xf]
        %v501 = vld [vmem:[%s453 + $0x3c] sm:$0xf]
        %v502 = vld [vmem:[%s457] sm:$0x1]
        %v503 = vld [vmem:[%s457 + $0x1] sm:$0x1]
        %v504 = vld [vmem:[%s457 + $0x2] sm:$0x1]
        %v505 = vld [vmem:[%s457 + $0x3] sm:$0x1]
        %v506 = vld [vmem:[%s462] sm:$0xf]
        %v507 = vld [vmem:[%s462 + $0x4] sm:$0xf]
        %v508 = vld [vmem:[%s462 + $0x8] sm:$0xf]
        %v509 = vld [vmem:[%s462 + $0xc] sm:$0xf]
        %v510 = vld [vmem:[%s467] sm:$0xf]
        %v511 = vld [vmem:[%s467 + $0x4] sm:$0xf]
        %v512 = vld [vmem:[%s467 + $0x8] sm:$0xf]
        %v513 = vld [vmem:[%s467 + $0xc] sm:$0xf]
        %v514 = vld [vmem:[%s472] sm:$0xf]
        %v515 = vld [vmem:[%s472 + $0x4] sm:$0xf]
        %v516 = vld [vmem:[%s472 + $0x8] sm:$0xf]
        %v517 = vld [vmem:[%s472 + $0xc] sm:$0xf]
        %v518 = vld [vmem:[%s472 + $0x10] sm:$0xf]
        %v519 = vld [vmem:[%s472 + $0x14] sm:$0xf]
        %v520 = vld [vmem:[%s472 + $0x18] sm:$0xf]
        %v521 = vld [vmem:[%s472 + $0x1c] sm:$0xf]
        %v522 = vld [vmem:[%s472 + $0x20] sm:$0xf]
        %v523 = vld [vmem:[%s472 + $0x24] sm:$0xf]
        %v524 = vld [vmem:[%s472 + $0x28] sm:$0xf]
        %v525 = vld [vmem:[%s472 + $0x2c] sm:$0xf]
        %v526 = vld [vmem:[%s472 + $0x30] sm:$0xf]
        %v527 = vld [vmem:[%s472 + $0x34] sm:$0xf]
        %v528 = vld [vmem:[%s472 + $0x38] sm:$0xf]
        %v529 = vld [vmem:[%s472 + $0x3c] sm:$0xf]
        %v530 = vld [vmem:[%s476] sm:$0x1]
        %v531 = vld [vmem:[%s476 + $0x1] sm:$0x1]
        %v532 = vld [vmem:[%s476 + $0x2] sm:$0x1]
        %v533 = vld [vmem:[%s476 + $0x3] sm:$0x1]
        %v534 = vld [vmem:[%s476 + $0x4] sm:$0x1]
        %v535 = vld [vmem:[%s476 + $0x5] sm:$0x1]
        %v536 = vld [vmem:[%s476 + $0x6] sm:$0x1]
        %v537 = vpack.c.bf16 %v485, %v485
        %v542 = vlaneseq
        %v543 = vshrl.u32 %v542, 7
        %v544 = vsub.s32 0, %v543
        %v545 = vrot.slane %v502, %v544
        %v546 = vlaneseq
        %v547 = vshrl.u32 %v546, 7
        %v548 = vsub.s32 0, %v547
        %v549 = vrot.slane %v503, %v548
        %v550 = vlaneseq
        %v551 = vshrl.u32 %v550, 7
        %v552 = vsub.s32 0, %v551
        %v553 = vrot.slane %v504, %v552
        %v554 = vlaneseq
        %v555 = vshrl.u32 %v554, 7
        %v556 = vsub.s32 0, %v555
        %v557 = vrot.slane %v505, %v556
        %v566 = vunpack.c.l.b16 %v486
        %v567 = vunpack.c.l.b16 %v487
        %v568 = vunpack.c.l.b16 %v488
        %v569 = vunpack.c.l.b16 %v489
        %v570 = vpack.c.b16 %v567, %v566
        %v571 = vpack.c.b16 %v569, %v568
        %vm574 = vcmask 261120
        %v576 = vsel %vm574, %v537, 0
        %578 = vmatprep.subr.bf16.mxu0 0
        %579 = vmatpush1.bf16.msra.mxu0 %v570
        %580 = vmatprep.subr.bf16.mxu0 0
        %581 = vmatpush1.bf16.msra.mxu0 %v571
        %582 = vmatprep.subr.bf16.mxu0 0
        %583 = vmatpush1.bf16.msra.mxu0 0
        %584 = vmatprep.subr.bf16.mxu0 0
        %585 = vmatpush1.bf16.msra.mxu0 0
        %586 = vmatprep.subr.bf16.mxu0 0
        %587 = vmatpush1.bf16.msra.mxu0 0
        %588 = vmatprep.subr.bf16.mxu0 0
        %589 = vmatpush1.bf16.msra.mxu0 0
        %590 = vmatprep.subr.bf16.mxu0 0
        %591 = vmatpush1.bf16.msra.mxu0 0
        %592 = vmatprep.subr.bf16.mxu0 0
        %593 = vmatpush1.bf16.msra.mxu0 0
        %594 = vmatprep.subr.bf16.mxu0 0
        %595 = vmatpush1.bf16.msra.mxu0 0
        %596 = vmatprep.subr.bf16.mxu0 0
        %597 = vmatpush1.bf16.msra.mxu0 0
        %598 = vmatprep.subr.bf16.mxu0 0
        %599 = vmatpush1.bf16.msra.mxu0 0
        %600 = vmatprep.subr.bf16.mxu0 0
        %601 = vmatpush1.bf16.msra.mxu0 0
        %602 = vmatprep.subr.bf16.mxu0 0
        %603 = vmatpush1.bf16.msra.mxu0 0
        %604 = vmatprep.subr.bf16.mxu0 0
        %605 = vmatpush1.bf16.msra.mxu0 0
        %606 = vmatprep.subr.bf16.mxu0 0
        %607 = vmatpush1.bf16.msra.mxu0 0
        %608 = vmatprep.subr.bf16.mxu0 0
        %609 = vmatpush1.bf16.msra.mxu0 0
        %610 = vmatprep.mubr.bf16.mxu0 0
        %611 = vmatmul.mubr.bf16.gmra.mrb[0].mxu0 %v576
        %v612 = vpop.f32.mrb[0].mxu0
        %v613 = vadd.f32 %v545, %v612
        %v614 = vpop.f32.mrb[0].mxu0
        %v615 = vpop.f32.mrb[0].mxu0
        %v616 = vpop.f32.mrb[0].mxu0
        %617 = vdwg.mxu0
        %v622 = vunpack.c.l.b16 %v490
        %v623 = vunpack.c.l.b16 %v491
        %v624 = vunpack.c.l.b16 %v492
        %v625 = vunpack.c.l.b16 %v493
        %v626 = vpack.c.b16 %v623, %v622
        %v627 = vpack.c.b16 %v625, %v624
        %630 = vmatprep.subr.bf16.mxu0 0
        %631 = vmatpush1.bf16.msra.mxu0 %v626
        %632 = vmatprep.subr.bf16.mxu0 0
        %633 = vmatpush1.bf16.msra.mxu0 %v627
        %634 = vmatprep.subr.bf16.mxu0 0
        %635 = vmatpush1.bf16.msra.mxu0 0
        %636 = vmatprep.subr.bf16.mxu0 0
        %637 = vmatpush1.bf16.msra.mxu0 0
        %638 = vmatprep.subr.bf16.mxu0 0
        %639 = vmatpush1.bf16.msra.mxu0 0
        %640 = vmatprep.subr.bf16.mxu0 0
        %641 = vmatpush1.bf16.msra.mxu0 0
        %642 = vmatprep.subr.bf16.mxu0 0
        %643 = vmatpush1.bf16.msra.mxu0 0
        %644 = vmatprep.subr.bf16.mxu0 0
        %645 = vmatpush1.bf16.msra.mxu0 0
        %646 = vmatprep.subr.bf16.mxu0 0
        %647 = vmatpush1.bf16.msra.mxu0 0
        %648 = vmatprep.subr.bf16.mxu0 0
        %649 = vmatpush1.bf16.msra.mxu0 0
        %650 = vmatprep.subr.bf16.mxu0 0
        %651 = vmatpush1.bf16.msra.mxu0 0
        %652 = vmatprep.subr.bf16.mxu0 0
        %653 = vmatpush1.bf16.msra.mxu0 0
        %654 = vmatprep.subr.bf16.mxu0 0
        %655 = vmatpush1.bf16.msra.mxu0 0
        %656 = vmatprep.subr.bf16.mxu0 0
        %657 = vmatpush1.bf16.msra.mxu0 0
        %658 = vmatprep.subr.bf16.mxu0 0
        %659 = vmatpush1.bf16.msra.mxu0 0
        %660 = vmatprep.subr.bf16.mxu0 0
        %661 = vmatpush1.bf16.msra.mxu0 0
        %662 = vmatprep.mubr.bf16.mxu0 0
        %663 = vmatmul.mubr.bf16.gmra.mrb[0].mxu0 %v576
        %v664 = vpop.f32.mrb[0].mxu0
        %v665 = vadd.f32 %v549, %v664
        %v666 = vpop.f32.mrb[0].mxu0
        %v667 = vpop.f32.mrb[0].mxu0
        %v668 = vpop.f32.mrb[0].mxu0
        %669 = vdwg.mxu0
        %v674 = vunpack.c.l.b16 %v494
        %v675 = vunpack.c.l.b16 %v495
        %v676 = vunpack.c.l.b16 %v496
        %v677 = vunpack.c.l.b16 %v497
        %v678 = vpack.c.b16 %v675, %v674
        %v679 = vpack.c.b16 %v677, %v676
        %682 = vmatprep.subr.bf16.mxu0 0
        %683 = vmatpush1.bf16.msra.mxu0 %v678
        %684 = vmatprep.subr.bf16.mxu0 0
        %685 = vmatpush1.bf16.msra.mxu0 %v679
        %686 = vmatprep.subr.bf16.mxu0 0
        %687 = vmatpush1.bf16.msra.mxu0 0
        %688 = vmatprep.subr.bf16.mxu0 0
        %689 = vmatpush1.bf16.msra.mxu0 0
        %690 = vmatprep.subr.bf16.mxu0 0
        %691 = vmatpush1.bf16.msra.mxu0 0
        %692 = vmatprep.subr.bf16.mxu0 0
        %693 = vmatpush1.bf16.msra.mxu0 0
        %694 = vmatprep.subr.bf16.mxu0 0
        %695 = vmatpush1.bf16.msra.mxu0 0
        %696 = vmatprep.subr.bf16.mxu0 0
        %697 = vmatpush1.bf16.msra.mxu0 0
        %698 = vmatprep.subr.bf16.mxu0 0
        %699 = vmatpush1.bf16.msra.mxu0 0
        %700 = vmatprep.subr.bf16.mxu0 0
        %701 = vmatpush1.bf16.msra.mxu0 0
        %702 = vmatprep.subr.bf16.mxu0 0
        %703 = vmatpush1.bf16.msra.mxu0 0
        %704 = vmatprep.subr.bf16.mxu0 0
        %705 = vmatpush1.bf16.msra.mxu0 0
        %706 = vmatprep.subr.bf16.mxu0 0
        %707 = vmatpush1.bf16.msra.mxu0 0
        %708 = vmatprep.subr.bf16.mxu0 0
        %709 = vmatpush1.bf16.msra.mxu0 0
        %710 = vmatprep.subr.bf16.mxu0 0
        %711 = vmatpush1.bf16.msra.mxu0 0
        %712 = vmatprep.subr.bf16.mxu0 0
        %713 = vmatpush1.bf16.msra.mxu0 0
        %714 = vmatprep.mubr.bf16.mxu0 0
        %715 = vmatmul.mubr.bf16.gmra.mrb[0].mxu0 %v576
        %v716 = vpop.f32.mrb[0].mxu0
        %v717 = vadd.f32 %v553, %v716
        %v718 = vpop.f32.mrb[0].mxu0
        %v719 = vpop.f32.mrb[0].mxu0
        %v720 = vpop.f32.mrb[0].mxu0
        %721 = vdwg.mxu0
        %v726 = vunpack.c.l.b16 %v498
        %v727 = vunpack.c.l.b16 %v499
        %v728 = vunpack.c.l.b16 %v500
        %v729 = vunpack.c.l.b16 %v501
        %v730 = vpack.c.b16 %v727, %v726
        %v731 = vpack.c.b16 %v729, %v728
        %734 = vmatprep.subr.bf16.mxu0 0
        %735 = vmatpush1.bf16.msra.mxu0 %v730
        %736 = vmatprep.subr.bf16.mxu0 0
        %737 = vmatpush1.bf16.msra.mxu0 %v731
        %738 = vmatprep.subr.bf16.mxu0 0
        %739 = vmatpush1.bf16.msra.mxu0 0
        %740 = vmatprep.subr.bf16.mxu0 0
        %741 = vmatpush1.bf16.msra.mxu0 0
        %742 = vmatprep.subr.bf16.mxu0 0
        %743 = vmatpush1.bf16.msra.mxu0 0
        %744 = vmatprep.subr.bf16.mxu0 0
        %745 = vmatpush1.bf16.msra.mxu0 0
        %746 = vmatprep.subr.bf16.mxu0 0
        %747 = vmatpush1.bf16.msra.mxu0 0
        %748 = vmatprep.subr.bf16.mxu0 0
        %749 = vmatpush1.bf16.msra.mxu0 0
        %750 = vmatprep.subr.bf16.mxu0 0
        %751 = vmatpush1.bf16.msra.mxu0 0
        %752 = vmatprep.subr.bf16.mxu0 0
        %753 = vmatpush1.bf16.msra.mxu0 0
        %754 = vmatprep.subr.bf16.mxu0 0
        %755 = vmatpush1.bf16.msra.mxu0 0
        %756 = vmatprep.subr.bf16.mxu0 0
        %757 = vmatpush1.bf16.msra.mxu0 0
        %758 = vmatprep.subr.bf16.mxu0 0
        %759 = vmatpush1.bf16.msra.mxu0 0
        %760 = vmatprep.subr.bf16.mxu0 0
        %761 = vmatpush1.bf16.msra.mxu0 0
        %762 = vmatprep.subr.bf16.mxu0 0
        %763 = vmatpush1.bf16.msra.mxu0 0
        %764 = vmatprep.subr.bf16.mxu0 0
        %765 = vmatpush1.bf16.msra.mxu0 0
        %766 = vmatprep.mubr.bf16.mxu0 0
        %767 = vmatmul.mubr.bf16.gmra.mrb[0].mxu0 %v576
        %v768 = vpop.f32.mrb[0].mxu0
        %v769 = vadd.f32 %v557, %v768
        %v770 = vpop.f32.mrb[0].mxu0
        %v771 = vpop.f32.mrb[0].mxu0
        %v772 = vpop.f32.mrb[0].mxu0
        %773 = vdwg.mxu0
        %v774 = vld [vmem:[%s448] sm:$0x1]
        %776 = vrot.lane.b32.xlu0 %v613, 120
        %v777 = vpop.permute.xlu0 %776
        %vm778 = vcmask 64512
        %v779 = vsel %vm778, %v613, 0
        %v781 = vsel %vm778, %v777, 0
        %783 = vmatprep.subr.mxu0 0.0
        %784 = vmatpush1.xpose.msra.mxu0 %v781
        %785 = vmatprep.subr.mxu0 0.0
        %786 = vmatpush1.xpose.msra.mxu0 0.0
        %787 = vmatprep.subr.mxu0 0.0
        %788 = vmatpush1.xpose.msra.mxu0 0.0
        %789 = vmatprep.subr.mxu0 0.0
        %790 = vmatpush1.xpose.msra.mxu0 0.0
        %791 = vmatprep.subr.mxu0 0.0
        %792 = vmatpush1.xpose.msra.mxu0 0.0
        %793 = vmatprep.subr.mxu0 0.0
        %794 = vmatpush1.xpose.msra.mxu0 0.0
        %795 = vmatprep.subr.mxu0 0.0
        %796 = vmatpush1.xpose.msra.mxu0 0.0
        %797 = vmatprep.subr.mxu0 0.0
        %798 = vmatpush1.xpose.msra.mxu0 0.0
        %799 = vmatprep.subr.mxu0 0.0
        %800 = vmatpush1.xpose.msra.mxu0 0.0
        %801 = vmatprep.subr.mxu0 0.0
        %802 = vmatpush1.xpose.msra.mxu0 0.0
        %803 = vmatprep.subr.mxu0 0.0
        %804 = vmatpush1.xpose.msra.mxu0 0.0
        %805 = vmatprep.subr.mxu0 0.0
        %806 = vmatpush1.xpose.msra.mxu0 0.0
        %807 = vmatprep.subr.mxu0 0.0
        %808 = vmatpush1.xpose.msra.mxu0 0.0
        %809 = vmatprep.subr.mxu0 0.0
        %810 = vmatpush1.xpose.msra.mxu0 0.0
        %811 = vmatprep.subr.mxu0 0.0
        %812 = vmatpush1.xpose.msra.mxu0 0.0
        %813 = vmatprep.subr.mxu0 0.0
        %814 = vmatpush1.xpose.msra.mxu0 0.0
        %815 = vmatprep.subr.mxu0 0.0
        %816 = vmatpush1.xpose.msra.mxu0 0.0
        %817 = vmatprep.subr.mxu0 0.0
        %818 = vmatpush1.xpose.msra.mxu0 0.0
        %819 = vmatprep.subr.mxu0 0.0
        %820 = vmatpush1.xpose.msra.mxu0 0.0
        %821 = vmatprep.subr.mxu0 0.0
        %822 = vmatpush1.xpose.msra.mxu0 0.0
        %823 = vmatprep.subr.mxu0 0.0
        %824 = vmatpush1.xpose.msra.mxu0 0.0
        %825 = vmatprep.subr.mxu0 0.0
        %826 = vmatpush1.xpose.msra.mxu0 0.0
        %827 = vmatprep.subr.mxu0 0.0
        %828 = vmatpush1.xpose.msra.mxu0 0.0
        %829 = vmatprep.subr.mxu0 0.0
        %830 = vmatpush1.xpose.msra.mxu0 0.0
        %831 = vmatprep.subr.mxu0 0.0
        %832 = vmatpush1.xpose.msra.mxu0 0.0
        %833 = vmatprep.subr.mxu0 0.0
        %834 = vmatpush1.xpose.msra.mxu0 0.0
        %835 = vmatprep.subr.mxu0 0.0
        %836 = vmatpush1.xpose.msra.mxu0 0.0
        %837 = vmatprep.subr.mxu0 0.0
        %838 = vmatpush1.xpose.msra.mxu0 0.0
        %839 = vmatprep.subr.mxu0 0.0
        %840 = vmatpush1.xpose.msra.mxu0 0.0
        %841 = vmatprep.subr.mxu0 0.0
        %842 = vmatpush1.xpose.msra.mxu0 0.0
        %843 = vmatprep.subr.mxu0 0.0
        %844 = vmatpush1.xpose.msra.mxu0 0.0
        %845 = vmatprep.subr.mxu0 0.0
        %846 = vmatpush1.xpose.msra.mxu0 0.0
        %847 = vmatprep.mubr.f32.mxu0 0.0
        %848 = vmatmul.mubr.f32.gmra.mrb[0].mxu0 %v779
        %v849 = vpop.f32.mrb[0].mxu0
        %v850 = vadd.f32 0.0, %v849
        %v851 = vpop.f32.mrb[0].mxu0
        %852 = vdwg.mxu0
        %854 = vrot.lane.b32.xlu0 %v665, 120
        %v855 = vpop.permute.xlu0 %854
        %v856 = vsel %vm778, %v665, 0
        %v858 = vsel %vm778, %v855, 0
        %860 = vmatprep.subr.mxu0 0.0
        %861 = vmatpush1.xpose.msra.mxu0 %v858
        %862 = vmatprep.subr.mxu0 0.0
        %863 = vmatpush1.xpose.msra.mxu0 0.0
        %864 = vmatprep.subr.mxu0 0.0
        %865 = vmatpush1.xpose.msra.mxu0 0.0
        %866 = vmatprep.subr.mxu0 0.0
        %867 = vmatpush1.xpose.msra.mxu0 0.0
        %868 = vmatprep.subr.mxu0 0.0
        %869 = vmatpush1.xpose.msra.mxu0 0.0
        %870 = vmatprep.subr.mxu0 0.0
        %871 = vmatpush1.xpose.msra.mxu0 0.0
        %872 = vmatprep.subr.mxu0 0.0
        %873 = vmatpush1.xpose.msra.mxu0 0.0
        %874 = vmatprep.subr.mxu0 0.0
        %875 = vmatpush1.xpose.msra.mxu0 0.0
        %876 = vmatprep.subr.mxu0 0.0
        %877 = vmatpush1.xpose.msra.mxu0 0.0
        %878 = vmatprep.subr.mxu0 0.0
        %879 = vmatpush1.xpose.msra.mxu0 0.0
        %880 = vmatprep.subr.mxu0 0.0
        %881 = vmatpush1.xpose.msra.mxu0 0.0
        %882 = vmatprep.subr.mxu0 0.0
        %883 = vmatpush1.xpose.msra.mxu0 0.0
        %884 = vmatprep.subr.mxu0 0.0
        %885 = vmatpush1.xpose.msra.mxu0 0.0
        %886 = vmatprep.subr.mxu0 0.0
        %887 = vmatpush1.xpose.msra.mxu0 0.0
        %888 = vmatprep.subr.mxu0 0.0
        %889 = vmatpush1.xpose.msra.mxu0 0.0
        %890 = vmatprep.subr.mxu0 0.0
        %891 = vmatpush1.xpose.msra.mxu0 0.0
        %892 = vmatprep.subr.mxu0 0.0
        %893 = vmatpush1.xpose.msra.mxu0 0.0
        %894 = vmatprep.subr.mxu0 0.0
        %895 = vmatpush1.xpose.msra.mxu0 0.0
        %896 = vmatprep.subr.mxu0 0.0
        %897 = vmatpush1.xpose.msra.mxu0 0.0
        %898 = vmatprep.subr.mxu0 0.0
        %899 = vmatpush1.xpose.msra.mxu0 0.0
        %900 = vmatprep.subr.mxu0 0.0
        %901 = vmatpush1.xpose.msra.mxu0 0.0
        %902 = vmatprep.subr.mxu0 0.0
        %903 = vmatpush1.xpose.msra.mxu0 0.0
        %904 = vmatprep.subr.mxu0 0.0
        %905 = vmatpush1.xpose.msra.mxu0 0.0
        %906 = vmatprep.subr.mxu0 0.0
        %907 = vmatpush1.xpose.msra.mxu0 0.0
        %908 = vmatprep.subr.mxu0 0.0
        %909 = vmatpush1.xpose.msra.mxu0 0.0
        %910 = vmatprep.subr.mxu0 0.0
        %911 = vmatpush1.xpose.msra.mxu0 0.0
        %912 = vmatprep.subr.mxu0 0.0
        %913 = vmatpush1.xpose.msra.mxu0 0.0
        %914 = vmatprep.subr.mxu0 0.0
        %915 = vmatpush1.xpose.msra.mxu0 0.0
        %916 = vmatprep.subr.mxu0 0.0
        %917 = vmatpush1.xpose.msra.mxu0 0.0
        %918 = vmatprep.subr.mxu0 0.0
        %919 = vmatpush1.xpose.msra.mxu0 0.0
        %920 = vmatprep.subr.mxu0 0.0
        %921 = vmatpush1.xpose.msra.mxu0 0.0
        %922 = vmatprep.subr.mxu0 0.0
        %923 = vmatpush1.xpose.msra.mxu0 0.0
        %924 = vmatprep.mubr.f32.mxu0 0.0
        %925 = vmatmul.mubr.f32.gmra.mrb[0].mxu0 %v856
        %v926 = vpop.f32.mrb[0].mxu0
        %v927 = vadd.f32 0.0, %v926
        %v928 = vpop.f32.mrb[0].mxu0
        %929 = vdwg.mxu0
        %931 = vrot.lane.b32.xlu0 %v717, 120
        %v932 = vpop.permute.xlu0 %931
        %v933 = vsel %vm778, %v717, 0
        %v935 = vsel %vm778, %v932, 0
        %937 = vmatprep.subr.mxu0 0.0
        %938 = vmatpush1.xpose.msra.mxu0 %v935
        %939 = vmatprep.subr.mxu0 0.0
        %940 = vmatpush1.xpose.msra.mxu0 0.0
        %941 = vmatprep.subr.mxu0 0.0
        %942 = vmatpush1.xpose.msra.mxu0 0.0
        %943 = vmatprep.subr.mxu0 0.0
        %944 = vmatpush1.xpose.msra.mxu0 0.0
        %945 = vmatprep.subr.mxu0 0.0
        %946 = vmatpush1.xpose.msra.mxu0 0.0
        %947 = vmatprep.subr.mxu0 0.0
        %948 = vmatpush1.xpose.msra.mxu0 0.0
        %949 = vmatprep.subr.mxu0 0.0
        %950 = vmatpush1.xpose.msra.mxu0 0.0
        %951 = vmatprep.subr.mxu0 0.0
        %952 = vmatpush1.xpose.msra.mxu0 0.0
        %953 = vmatprep.subr.mxu0 0.0
        %954 = vmatpush1.xpose.msra.mxu0 0.0
        %955 = vmatprep.subr.mxu0 0.0
        %956 = vmatpush1.xpose.msra.mxu0 0.0
        %957 = vmatprep.subr.mxu0 0.0
        %958 = vmatpush1.xpose.msra.mxu0 0.0
        %959 = vmatprep.subr.mxu0 0.0
        %960 = vmatpush1.xpose.msra.mxu0 0.0
        %961 = vmatprep.subr.mxu0 0.0
        %962 = vmatpush1.xpose.msra.mxu0 0.0
        %963 = vmatprep.subr.mxu0 0.0
        %964 = vmatpush1.xpose.msra.mxu0 0.0
        %965 = vmatprep.subr.mxu0 0.0
        %966 = vmatpush1.xpose.msra.mxu0 0.0
        %967 = vmatprep.subr.mxu0 0.0
        %968 = vmatpush1.xpose.msra.mxu0 0.0
        %969 = vmatprep.subr.mxu0 0.0
        %970 = vmatpush1.xpose.msra.mxu0 0.0
        %971 = vmatprep.subr.mxu0 0.0
        %972 = vmatpush1.xpose.msra.mxu0 0.0
        %973 = vmatprep.subr.mxu0 0.0
        %974 = vmatpush1.xpose.msra.mxu0 0.0
        %975 = vmatprep.subr.mxu0 0.0
        %976 = vmatpush1.xpose.msra.mxu0 0.0
        %977 = vmatprep.subr.mxu0 0.0
        %978 = vmatpush1.xpose.msra.mxu0 0.0
        %979 = vmatprep.subr.mxu0 0.0
        %980 = vmatpush1.xpose.msra.mxu0 0.0
        %981 = vmatprep.subr.mxu0 0.0
        %982 = vmatpush1.xpose.msra.mxu0 0.0
        %983 = vmatprep.subr.mxu0 0.0
        %984 = vmatpush1.xpose.msra.mxu0 0.0
        %985 = vmatprep.subr.mxu0 0.0
        %986 = vmatpush1.xpose.msra.mxu0 0.0
        %987 = vmatprep.subr.mxu0 0.0
        %988 = vmatpush1.xpose.msra.mxu0 0.0
        %989 = vmatprep.subr.mxu0 0.0
        %990 = vmatpush1.xpose.msra.mxu0 0.0
        %991 = vmatprep.subr.mxu0 0.0
        %992 = vmatpush1.xpose.msra.mxu0 0.0
        %993 = vmatprep.subr.mxu0 0.0
        %994 = vmatpush1.xpose.msra.mxu0 0.0
        %995 = vmatprep.subr.mxu0 0.0
        %996 = vmatpush1.xpose.msra.mxu0 0.0
        %997 = vmatprep.subr.mxu0 0.0
        %998 = vmatpush1.xpose.msra.mxu0 0.0
        %999 = vmatprep.subr.mxu0 0.0
        %1000 = vmatpush1.xpose.msra.mxu0 0.0
        %1001 = vmatprep.mubr.f32.mxu0 0.0
        %1002 = vmatmul.mubr.f32.gmra.mrb[0].mxu0 %v933
        %v1003 = vpop.f32.mrb[0].mxu0
        %v1004 = vadd.f32 0.0, %v1003
        %v1005 = vpop.f32.mrb[0].mxu0
        %1006 = vdwg.mxu0
        %1008 = vrot.lane.b32.xlu0 %v769, 120
        %v1009 = vpop.permute.xlu0 %1008
        %v1010 = vsel %vm778, %v769, 0
        %v1012 = vsel %vm778, %v1009, 0
        %1014 = vmatprep.subr.mxu0 0.0
        %1015 = vmatpush1.xpose.msra.mxu0 %v1012
        %1016 = vmatprep.subr.mxu0 0.0
        %1017 = vmatpush1.xpose.msra.mxu0 0.0
        %1018 = vmatprep.subr.mxu0 0.0
        %1019 = vmatpush1.xpose.msra.mxu0 0.0
        %1020 = vmatprep.subr.mxu0 0.0
        %1021 = vmatpush1.xpose.msra.mxu0 0.0
        %1022 = vmatprep.subr.mxu0 0.0
        %1023 = vmatpush1.xpose.msra.mxu0 0.0
        %1024 = vmatprep.subr.mxu0 0.0
        %1025 = vmatpush1.xpose.msra.mxu0 0.0
        %1026 = vmatprep.subr.mxu0 0.0
        %1027 = vmatpush1.xpose.msra.mxu0 0.0
        %1028 = vmatprep.subr.mxu0 0.0
        %1029 = vmatpush1.xpose.msra.mxu0 0.0
        %1030 = vmatprep.subr.mxu0 0.0
        %1031 = vmatpush1.xpose.msra.mxu0 0.0
        %1032 = vmatprep.subr.mxu0 0.0
        %1033 = vmatpush1.xpose.msra.mxu0 0.0
        %1034 = vmatprep.subr.mxu0 0.0
        %1035 = vmatpush1.xpose.msra.mxu0 0.0
        %1036 = vmatprep.subr.mxu0 0.0
        %1037 = vmatpush1.xpose.msra.mxu0 0.0
        %1038 = vmatprep.subr.mxu0 0.0
        %1039 = vmatpush1.xpose.msra.mxu0 0.0
        %1040 = vmatprep.subr.mxu0 0.0
        %1041 = vmatpush1.xpose.msra.mxu0 0.0
        %1042 = vmatprep.subr.mxu0 0.0
        %1043 = vmatpush1.xpose.msra.mxu0 0.0
        %1044 = vmatprep.subr.mxu0 0.0
        %1045 = vmatpush1.xpose.msra.mxu0 0.0
        %1046 = vmatprep.subr.mxu0 0.0
        %1047 = vmatpush1.xpose.msra.mxu0 0.0
        %1048 = vmatprep.subr.mxu0 0.0
        %1049 = vmatpush1.xpose.msra.mxu0 0.0
        %1050 = vmatprep.subr.mxu0 0.0
        %1051 = vmatpush1.xpose.msra.mxu0 0.0
        %1052 = vmatprep.subr.mxu0 0.0
        %1053 = vmatpush1.xpose.msra.mxu0 0.0
        %1054 = vmatprep.subr.mxu0 0.0
        %1055 = vmatpush1.xpose.msra.mxu0 0.0
        %1056 = vmatprep.subr.mxu0 0.0
        %1057 = vmatpush1.xpose.msra.mxu0 0.0
        %1058 = vmatprep.subr.mxu0 0.0
        %1059 = vmatpush1.xpose.msra.mxu0 0.0
        %1060 = vmatprep.subr.mxu0 0.0
        %1061 = vmatpush1.xpose.msra.mxu0 0.0
        %1062 = vmatprep.subr.mxu0 0.0
        %1063 = vmatpush1.xpose.msra.mxu0 0.0
        %1064 = vmatprep.subr.mxu0 0.0
        %1065 = vmatpush1.xpose.msra.mxu0 0.0
        %1066 = vmatprep.subr.mxu0 0.0
        %1067 = vmatpush1.xpose.msra.mxu0 0.0
        %1068 = vmatprep.subr.mxu0 0.0
        %1069 = vmatpush1.xpose.msra.mxu0 0.0
        %1070 = vmatprep.subr.mxu0 0.0
        %1071 = vmatpush1.xpose.msra.mxu0 0.0
        %1072 = vmatprep.subr.mxu0 0.0
        %1073 = vmatpush1.xpose.msra.mxu0 0.0
        %1074 = vmatprep.subr.mxu0 0.0
        %1075 = vmatpush1.xpose.msra.mxu0 0.0
        %1076 = vmatprep.subr.mxu0 0.0
        %1077 = vmatpush1.xpose.msra.mxu0 0.0
        %1078 = vmatprep.mubr.f32.mxu0 0.0
        %1079 = vmatmul.mubr.f32.gmra.mrb[0].mxu0 %v1010
        %v1080 = vpop.f32.mrb[0].mxu0
        %v1081 = vadd.f32 0.0, %v1080
        %v1082 = vpop.f32.mrb[0].mxu0
        %1083 = vdwg.mxu0
        %v1084 = vmul.f32 %v850, 0.35355338
        %v1085 = vmul.f32 %v927, 0.35355338
        %v1086 = vmul.f32 %v1004, 0.35355338
        %v1087 = vmul.f32 %v1081, 0.35355338
        %v1089 = vlaneseq
        %v1090 = vshrl.u32 %v1089, 7
        %v1091 = vsub.s32 0, %v1090
        %v1092 = vrot.slane %v774, %v1091
        %v1094 = vadd.f32 %v1084, %v1092
        %v1095 = vadd.f32 %v1085, %v1092
        %v1096 = vadd.f32 %v1086, %v1092
        %v1097 = vadd.f32 %v1087, %v1092
        %v1098 = vsel %vm778, %v1094, -inf
        %1099 = vmax.xlane.f32.xlu0 %v1098
        %v1100 = vpop.xlane.xlu0 %1099
        %v1101 = vsel %vm778, %v1095, -inf
        %1102 = vmax.xlane.f32.xlu0 %v1101
        %v1103 = vpop.xlane.xlu0 %1102
        %v1104 = vsel %vm778, %v1096, -inf
        %1105 = vmax.xlane.f32.xlu0 %v1104
        %v1106 = vpop.xlane.xlu0 %1105
        %v1107 = vsel %vm778, %v1097, -inf
        %1108 = vmax.xlane.f32.xlu0 %v1107
        %v1109 = vpop.xlane.xlu0 %1108
        %v1110 = vsub.f32 %v1094, %v1100
        %v1111 = vsub.f32 %v1095, %v1103
        %v1112 = vsub.f32 %v1096, %v1106
        %v1113 = vsub.f32 %v1097, %v1109
        %v1114 = vmul.f32 %v1110, 1.442695
        %v1115 = vpow.pop %v1114
        %v1116 = vmul.f32 %v1111, 1.442695
        %v1117 = vpow.pop %v1116
        %v1118 = vmul.f32 %v1112, 1.442695
        %v1119 = vpow.pop %v1118
        %v1120 = vmul.f32 %v1113, 1.442695
        %v1121 = vpow.pop %v1120
        %v1122 = vsel %vm778, %v1115, 0.0
        %1123 = vadd.xlane.f32.xlu0 %v1122
        %v1124 = vpop.xlane.xlu0 %1123
        %v1125 = vsel %vm778, %v1117, 0.0
        %1126 = vadd.xlane.f32.xlu0 %v1125
        %v1127 = vpop.xlane.xlu0 %1126
        %v1128 = vsel %vm778, %v1119, 0.0
        %1129 = vadd.xlane.f32.xlu0 %v1128
        %v1130 = vpop.xlane.xlu0 %1129
        %v1131 = vsel %vm778, %v1121, 0.0
        %1132 = vadd.xlane.f32.xlu0 %v1131
        %v1133 = vpop.xlane.xlu0 %1132
        %v1134 = vrcp.pop %v1124
        %v1135 = vmul.f32 %v1115, %v1134
        %v1136 = vrcp.pop %v1127
        %v1137 = vmul.f32 %v1117, %v1136
        %v1138 = vrcp.pop %v1130
        %v1139 = vmul.f32 %v1119, %v1138
        %v1140 = vrcp.pop %v1133
        %v1141 = vmul.f32 %v1121, %v1140
        %1142 = vrot.lane.b32.xlu0 %v613, 112
        %v1143 = vpop.permute.xlu0 %1142
        %v1146 = vsel %vm778, %v1135, 0
        %1148 = vmatprep.subr.mxu0 0.0
        %1149 = vmatpush1.msra.mxu0 %v1143
        %1150 = vmatprep.subr.mxu0 0.0
        %1151 = vmatpush1.msra.mxu0 0.0
        %1152 = vmatprep.subr.mxu0 0.0
        %1153 = vmatpush1.msra.mxu0 0.0
        %1154 = vmatprep.subr.mxu0 0.0
        %1155 = vmatpush1.msra.mxu0 0.0
        %1156 = vmatprep.subr.mxu0 0.0
        %1157 = vmatpush1.msra.mxu0 0.0
        %1158 = vmatprep.subr.mxu0 0.0
        %1159 = vmatpush1.msra.mxu0 0.0
        %1160 = vmatprep.subr.mxu0 0.0
        %1161 = vmatpush1.msra.mxu0 0.0
        %1162 = vmatprep.subr.mxu0 0.0
        %1163 = vmatpush1.msra.mxu0 0.0
        %1164 = vmatprep.subr.mxu0 0.0
        %1165 = vmatpush1.msra.mxu0 0.0
        %1166 = vmatprep.subr.mxu0 0.0
        %1167 = vmatpush1.msra.mxu0 0.0
        %1168 = vmatprep.subr.mxu0 0.0
        %1169 = vmatpush1.msra.mxu0 0.0
        %1170 = vmatprep.subr.mxu0 0.0
        %1171 = vmatpush1.msra.mxu0 0.0
        %1172 = vmatprep.subr.mxu0 0.0
        %1173 = vmatpush1.msra.mxu0 0.0
        %1174 = vmatprep.subr.mxu0 0.0
        %1175 = vmatpush1.msra.mxu0 0.0
        %1176 = vmatprep.subr.mxu0 0.0
        %1177 = vmatpush1.msra.mxu0 0.0
        %1178 = vmatprep.subr.mxu0 0.0
        %1179 = vmatpush1.msra.mxu0 0.0
        %1180 = vmatprep.subr.mxu0 0.0
        %1181 = vmatpush1.msra.mxu0 0.0
        %1182 = vmatprep.subr.mxu0 0.0
        %1183 = vmatpush1.msra.mxu0 0.0
        %1184 = vmatprep.subr.mxu0 0.0
        %1185 = vmatpush1.msra.mxu0 0.0
        %1186 = vmatprep.subr.mxu0 0.0
        %1187 = vmatpush1.msra.mxu0 0.0
        %1188 = vmatprep.subr.mxu0 0.0
        %1189 = vmatpush1.msra.mxu0 0.0
        %1190 = vmatprep.subr.mxu0 0.0
        %1191 = vmatpush1.msra.mxu0 0.0
        %1192 = vmatprep.subr.mxu0 0.0
        %1193 = vmatpush1.msra.mxu0 0.0
        %1194 = vmatprep.subr.mxu0 0.0
        %1195 = vmatpush1.msra.mxu0 0.0
        %1196 = vmatprep.subr.mxu0 0.0
        %1197 = vmatpush1.msra.mxu0 0.0
        %1198 = vmatprep.subr.mxu0 0.0
        %1199 = vmatpush1.msra.mxu0 0.0
        %1200 = vmatprep.subr.mxu0 0.0
        %1201 = vmatpush1.msra.mxu0 0.0
        %1202 = vmatprep.subr.mxu0 0.0
        %1203 = vmatpush1.msra.mxu0 0.0
        %1204 = vmatprep.subr.mxu0 0.0
        %1205 = vmatpush1.msra.mxu0 0.0
        %1206 = vmatprep.subr.mxu0 0.0
        %1207 = vmatpush1.msra.mxu0 0.0
        %1208 = vmatprep.subr.mxu0 0.0
        %1209 = vmatpush1.msra.mxu0 0.0
        %1210 = vmatprep.subr.mxu0 0.0
        %1211 = vmatpush1.msra.mxu0 0.0
        %1212 = vmatprep.mubr.f32.mxu0 0.0
        %1213 = vmatmul.mubr.f32.gmra.mrb[0].mxu0 %v1146
        %v1214 = vpop.f32.mrb[0].mxu0
        %v1215 = vadd.f32 0.0, %v1214
        %v1216 = vpop.f32.mrb[0].mxu0
        %1217 = vdwg.mxu0
        %1218 = vrot.lane.b32.xlu0 %v665, 112
        %v1219 = vpop.permute.xlu0 %1218
        %v1222 = vsel %vm778, %v1137, 0
        %1224 = vmatprep.subr.mxu0 0.0
        %1225 = vmatpush1.msra.mxu0 %v1219
        %1226 = vmatprep.subr.mxu0 0.0
        %1227 = vmatpush1.msra.mxu0 0.0
        %1228 = vmatprep.subr.mxu0 0.0
        %1229 = vmatpush1.msra.mxu0 0.0
        %1230 = vmatprep.subr.mxu0 0.0
        %1231 = vmatpush1.msra.mxu0 0.0
        %1232 = vmatprep.subr.mxu0 0.0
        %1233 = vmatpush1.msra.mxu0 0.0
        %1234 = vmatprep.subr.mxu0 0.0
        %1235 = vmatpush1.msra.mxu0 0.0
        %1236 = vmatprep.subr.mxu0 0.0
        %1237 = vmatpush1.msra.mxu0 0.0
        %1238 = vmatprep.subr.mxu0 0.0
        %1239 = vmatpush1.msra.mxu0 0.0
        %1240 = vmatprep.subr.mxu0 0.0
        %1241 = vmatpush1.msra.mxu0 0.0
        %1242 = vmatprep.subr.mxu0 0.0
        %1243 = vmatpush1.msra.mxu0 0.0
        %1244 = vmatprep.subr.mxu0 0.0
        %1245 = vmatpush1.msra.mxu0 0.0
        %1246 = vmatprep.subr.mxu0 0.0
        %1247 = vmatpush1.msra.mxu0 0.0
        %1248 = vmatprep.subr.mxu0 0.0
        %1249 = vmatpush1.msra.mxu0 0.0
        %1250 = vmatprep.subr.mxu0 0.0
        %1251 = vmatpush1.msra.mxu0 0.0
        %1252 = vmatprep.subr.mxu0 0.0
        %1253 = vmatpush1.msra.mxu0 0.0
        %1254 = vmatprep.subr.mxu0 0.0
        %1255 = vmatpush1.msra.mxu0 0.0
        %1256 = vmatprep.subr.mxu0 0.0
        %1257 = vmatpush1.msra.mxu0 0.0
        %1258 = vmatprep.subr.mxu0 0.0
        %1259 = vmatpush1.msra.mxu0 0.0
        %1260 = vmatprep.subr.mxu0 0.0
        %1261 = vmatpush1.msra.mxu0 0.0
        %1262 = vmatprep.subr.mxu0 0.0
        %1263 = vmatpush1.msra.mxu0 0.0
        %1264 = vmatprep.subr.mxu0 0.0
        %1265 = vmatpush1.msra.mxu0 0.0
        %1266 = vmatprep.subr.mxu0 0.0
        %1267 = vmatpush1.msra.mxu0 0.0
        %1268 = vmatprep.subr.mxu0 0.0
        %1269 = vmatpush1.msra.mxu0 0.0
        %1270 = vmatprep.subr.mxu0 0.0
        %1271 = vmatpush1.msra.mxu0 0.0
        %1272 = vmatprep.subr.mxu0 0.0
        %1273 = vmatpush1.msra.mxu0 0.0
        %1274 = vmatprep.subr.mxu0 0.0
        %1275 = vmatpush1.msra.mxu0 0.0
        %1276 = vmatprep.subr.mxu0 0.0
        %1277 = vmatpush1.msra.mxu0 0.0
        %1278 = vmatprep.subr.mxu0 0.0
        %1279 = vmatpush1.msra.mxu0 0.0
        %1280 = vmatprep.subr.mxu0 0.0
        %1281 = vmatpush1.msra.mxu0 0.0
        %1282 = vmatprep.subr.mxu0 0.0
        %1283 = vmatpush1.msra.mxu0 0.0
        %1284 = vmatprep.subr.mxu0 0.0
        %1285 = vmatpush1.msra.mxu0 0.0
        %1286 = vmatprep.subr.mxu0 0.0
        %1287 = vmatpush1.msra.mxu0 0.0
        %1288 = vmatprep.mubr.f32.mxu0 0.0
        %1289 = vmatmul.mubr.f32.gmra.mrb[0].mxu0 %v1222
        %v1290 = vpop.f32.mrb[0].mxu0
        %v1291 = vadd.f32 0.0, %v1290
        %v1292 = vpop.f32.mrb[0].mxu0
        %1293 = vdwg.mxu0
        %1294 = vrot.lane.b32.xlu0 %v717, 112
        %v1295 = vpop.permute.xlu0 %1294
        %v1298 = vsel %vm778, %v1139, 0
        %1300 = vmatprep.subr.mxu0 0.0
        %1301 = vmatpush1.msra.mxu0 %v1295
        %1302 = vmatprep.subr.mxu0 0.0
        %1303 = vmatpush1.msra.mxu0 0.0
        %1304 = vmatprep.subr.mxu0 0.0
        %1305 = vmatpush1.msra.mxu0 0.0
        %1306 = vmatprep.subr.mxu0 0.0
        %1307 = vmatpush1.msra.mxu0 0.0
        %1308 = vmatprep.subr.mxu0 0.0
        %1309 = vmatpush1.msra.mxu0 0.0
        %1310 = vmatprep.subr.mxu0 0.0
        %1311 = vmatpush1.msra.mxu0 0.0
        %1312 = vmatprep.subr.mxu0 0.0
        %1313 = vmatpush1.msra.mxu0 0.0
        %1314 = vmatprep.subr.mxu0 0.0
        %1315 = vmatpush1.msra.mxu0 0.0
        %1316 = vmatprep.subr.mxu0 0.0
        %1317 = vmatpush1.msra.mxu0 0.0
        %1318 = vmatprep.subr.mxu0 0.0
        %1319 = vmatpush1.msra.mxu0 0.0
        %1320 = vmatprep.subr.mxu0 0.0
        %1321 = vmatpush1.msra.mxu0 0.0
        %1322 = vmatprep.subr.mxu0 0.0
        %1323 = vmatpush1.msra.mxu0 0.0
        %1324 = vmatprep.subr.mxu0 0.0
        %1325 = vmatpush1.msra.mxu0 0.0
        %1326 = vmatprep.subr.mxu0 0.0
        %1327 = vmatpush1.msra.mxu0 0.0
        %1328 = vmatprep.subr.mxu0 0.0
        %1329 = vmatpush1.msra.mxu0 0.0
        %1330 = vmatprep.subr.mxu0 0.0
        %1331 = vmatpush1.msra.mxu0 0.0
        %1332 = vmatprep.subr.mxu0 0.0
        %1333 = vmatpush1.msra.mxu0 0.0
        %1334 = vmatprep.subr.mxu0 0.0
        %1335 = vmatpush1.msra.mxu0 0.0
        %1336 = vmatprep.subr.mxu0 0.0
        %1337 = vmatpush1.msra.mxu0 0.0
        %1338 = vmatprep.subr.mxu0 0.0
        %1339 = vmatpush1.msra.mxu0 0.0
        %1340 = vmatprep.subr.mxu0 0.0
        %1341 = vmatpush1.msra.mxu0 0.0
        %1342 = vmatprep.subr.mxu0 0.0
        %1343 = vmatpush1.msra.mxu0 0.0
        %1344 = vmatprep.subr.mxu0 0.0
        %1345 = vmatpush1.msra.mxu0 0.0
        %1346 = vmatprep.subr.mxu0 0.0
        %1347 = vmatpush1.msra.mxu0 0.0
        %1348 = vmatprep.subr.mxu0 0.0
        %1349 = vmatpush1.msra.mxu0 0.0
        %1350 = vmatprep.subr.mxu0 0.0
        %1351 = vmatpush1.msra.mxu0 0.0
        %1352 = vmatprep.subr.mxu0 0.0
        %1353 = vmatpush1.msra.mxu0 0.0
        %1354 = vmatprep.subr.mxu0 0.0
        %1355 = vmatpush1.msra.mxu0 0.0
        %1356 = vmatprep.subr.mxu0 0.0
        %1357 = vmatpush1.msra.mxu0 0.0
        %1358 = vmatprep.subr.mxu0 0.0
        %1359 = vmatpush1.msra.mxu0 0.0
        %1360 = vmatprep.subr.mxu0 0.0
        %1361 = vmatpush1.msra.mxu0 0.0
        %1362 = vmatprep.subr.mxu0 0.0
        %1363 = vmatpush1.msra.mxu0 0.0
        %1364 = vmatprep.mubr.f32.mxu0 0.0
        %1365 = vmatmul.mubr.f32.gmra.mrb[0].mxu0 %v1298
        %v1366 = vpop.f32.mrb[0].mxu0
        %v1367 = vadd.f32 0.0, %v1366
        %v1368 = vpop.f32.mrb[0].mxu0
        %1369 = vdwg.mxu0
        %1370 = vrot.lane.b32.xlu0 %v769, 112
        %v1371 = vpop.permute.xlu0 %1370
        %v1374 = vsel %vm778, %v1141, 0
        %1376 = vmatprep.subr.mxu0 0.0
        %1377 = vmatpush1.msra.mxu0 %v1371
        %1378 = vmatprep.subr.mxu0 0.0
        %1379 = vmatpush1.msra.mxu0 0.0
        %1380 = vmatprep.subr.mxu0 0.0
        %1381 = vmatpush1.msra.mxu0 0.0
        %1382 = vmatprep.subr.mxu0 0.0
        %1383 = vmatpush1.msra.mxu0 0.0
        %1384 = vmatprep.subr.mxu0 0.0
        %1385 = vmatpush1.msra.mxu0 0.0
        %1386 = vmatprep.subr.mxu0 0.0
        %1387 = vmatpush1.msra.mxu0 0.0
        %1388 = vmatprep.subr.mxu0 0.0
        %1389 = vmatpush1.msra.mxu0 0.0
        %1390 = vmatprep.subr.mxu0 0.0
        %1391 = vmatpush1.msra.mxu0 0.0
        %1392 = vmatprep.subr.mxu0 0.0
        %1393 = vmatpush1.msra.mxu0 0.0
        %1394 = vmatprep.subr.mxu0 0.0
        %1395 = vmatpush1.msra.mxu0 0.0
        %1396 = vmatprep.subr.mxu0 0.0
        %1397 = vmatpush1.msra.mxu0 0.0
        %1398 = vmatprep.subr.mxu0 0.0
        %1399 = vmatpush1.msra.mxu0 0.0
        %1400 = vmatprep.subr.mxu0 0.0
        %1401 = vmatpush1.msra.mxu0 0.0
        %1402 = vmatprep.subr.mxu0 0.0
        %1403 = vmatpush1.msra.mxu0 0.0
        %1404 = vmatprep.subr.mxu0 0.0
        %1405 = vmatpush1.msra.mxu0 0.0
        %1406 = vmatprep.subr.mxu0 0.0
        %1407 = vmatpush1.msra.mxu0 0.0
        %1408 = vmatprep.subr.mxu0 0.0
        %1409 = vmatpush1.msra.mxu0 0.0
        %1410 = vmatprep.subr.mxu0 0.0
        %1411 = vmatpush1.msra.mxu0 0.0
        %1412 = vmatprep.subr.mxu0 0.0
        %1413 = vmatpush1.msra.mxu0 0.0
        %1414 = vmatprep.subr.mxu0 0.0
        %1415 = vmatpush1.msra.mxu0 0.0
        %1416 = vmatprep.subr.mxu0 0.0
        %1417 = vmatpush1.msra.mxu0 0.0
        %1418 = vmatprep.subr.mxu0 0.0
        %1419 = vmatpush1.msra.mxu0 0.0
        %1420 = vmatprep.subr.mxu0 0.0
        %1421 = vmatpush1.msra.mxu0 0.0
        %1422 = vmatprep.subr.mxu0 0.0
        %1423 = vmatpush1.msra.mxu0 0.0
        %1424 = vmatprep.subr.mxu0 0.0
        %1425 = vmatpush1.msra.mxu0 0.0
        %1426 = vmatprep.subr.mxu0 0.0
        %1427 = vmatpush1.msra.mxu0 0.0
        %1428 = vmatprep.subr.mxu0 0.0
        %1429 = vmatpush1.msra.mxu0 0.0
        %1430 = vmatprep.subr.mxu0 0.0
        %1431 = vmatpush1.msra.mxu0 0.0
        %1432 = vmatprep.subr.mxu0 0.0
        %1433 = vmatpush1.msra.mxu0 0.0
        %1434 = vmatprep.subr.mxu0 0.0
        %1435 = vmatpush1.msra.mxu0 0.0
        %1436 = vmatprep.subr.mxu0 0.0
        %1437 = vmatpush1.msra.mxu0 0.0
        %1438 = vmatprep.subr.mxu0 0.0
        %1439 = vmatpush1.msra.mxu0 0.0
        %1440 = vmatprep.mubr.f32.mxu0 0.0
        %1441 = vmatmul.mubr.f32.gmra.mrb[0].mxu0 %v1374
        %v1442 = vpop.f32.mrb[0].mxu0
        %v1443 = vadd.f32 0.0, %v1442
        %v1444 = vpop.f32.mrb[0].mxu0
        %1445 = vdwg.mxu0
        %v1446 = vpack.c.bf16 %v1215, %v1215
        %v1447 = vpack.c.bf16 %v1291, %v1291
        %v1448 = vpack.c.bf16 %v1367, %v1367
        %v1449 = vpack.c.bf16 %v1443, %v1443
        %v1451 = vsel %vm778, %v1446, 0
        %vm1453 = vcmask 1043456
        %v1455 = vsel %vm1453, %v506, 0
        %1457 = vmatprep.subr.bf16.mxu0 0
        %1458 = vmatpush1.bf16.msra.mxu0 %v1455
        %1459 = vmatprep.subr.bf16.mxu0 0
        %1460 = vmatpush1.bf16.msra.mxu0 0
        %1461 = vmatprep.subr.bf16.mxu0 0
        %1462 = vmatpush1.bf16.msra.mxu0 0
        %1463 = vmatprep.subr.bf16.mxu0 0
        %1464 = vmatpush1.bf16.msra.mxu0 0
        %1465 = vmatprep.subr.bf16.mxu0 0
        %1466 = vmatpush1.bf16.msra.mxu0 0
        %1467 = vmatprep.subr.bf16.mxu0 0
        %1468 = vmatpush1.bf16.msra.mxu0 0
        %1469 = vmatprep.subr.bf16.mxu0 0
        %1470 = vmatpush1.bf16.msra.mxu0 0
        %1471 = vmatprep.subr.bf16.mxu0 0
        %1472 = vmatpush1.bf16.msra.mxu0 0
        %1473 = vmatprep.subr.bf16.mxu0 0
        %1474 = vmatpush1.bf16.msra.mxu0 0
        %1475 = vmatprep.subr.bf16.mxu0 0
        %1476 = vmatpush1.bf16.msra.mxu0 0
        %1477 = vmatprep.subr.bf16.mxu0 0
        %1478 = vmatpush1.bf16.msra.mxu0 0
        %1479 = vmatprep.subr.bf16.mxu0 0
        %1480 = vmatpush1.bf16.msra.mxu0 0
        %1481 = vmatprep.subr.bf16.mxu0 0
        %1482 = vmatpush1.bf16.msra.mxu0 0
        %1483 = vmatprep.subr.bf16.mxu0 0
        %1484 = vmatpush1.bf16.msra.mxu0 0
        %1485 = vmatprep.subr.bf16.mxu0 0
        %1486 = vmatpush1.bf16.msra.mxu0 0
        %1487 = vmatprep.subr.bf16.mxu0 0
        %1488 = vmatpush1.bf16.msra.mxu0 0
        %1489 = vmatprep.mubr.bf16.mxu0 0
        %1490 = vmatmul.mubr.bf16.gmra.mrb[0].mxu0 %v1451
        %v1491 = vpop.f32.mrb[0].mxu0
        %v1492 = vadd.f32 0.0, %v1491
        %v1493 = vpop.f32.mrb[0].mxu0
        %v1494 = vpop.f32.mrb[0].mxu0
        %v1495 = vpop.f32.mrb[0].mxu0
        %1496 = vdwg.mxu0
        %v1498 = vsel %vm778, %v1447, 0
        %v1501 = vsel %vm1453, %v507, 0
        %1503 = vmatprep.subr.bf16.mxu0 0
        %1504 = vmatpush1.bf16.msra.mxu0 %v1501
        %1505 = vmatprep.subr.bf16.mxu0 0
        %1506 = vmatpush1.bf16.msra.mxu0 0
        %1507 = vmatprep.subr.bf16.mxu0 0
        %1508 = vmatpush1.bf16.msra.mxu0 0
        %1509 = vmatprep.subr.bf16.mxu0 0
        %1510 = vmatpush1.bf16.msra.mxu0 0
        %1511 = vmatprep.subr.bf16.mxu0 0
        %1512 = vmatpush1.bf16.msra.mxu0 0
        %1513 = vmatprep.subr.bf16.mxu0 0
        %1514 = vmatpush1.bf16.msra.mxu0 0
        %1515 = vmatprep.subr.bf16.mxu0 0
        %1516 = vmatpush1.bf16.msra.mxu0 0
        %1517 = vmatprep.subr.bf16.mxu0 0
        %1518 = vmatpush1.bf16.msra.mxu0 0
        %1519 = vmatprep.subr.bf16.mxu0 0
        %1520 = vmatpush1.bf16.msra.mxu0 0
        %1521 = vmatprep.subr.bf16.mxu0 0
        %1522 = vmatpush1.bf16.msra.mxu0 0
        %1523 = vmatprep.subr.bf16.mxu0 0
        %1524 = vmatpush1.bf16.msra.mxu0 0
        %1525 = vmatprep.subr.bf16.mxu0 0
        %1526 = vmatpush1.bf16.msra.mxu0 0
        %1527 = vmatprep.subr.bf16.mxu0 0
        %1528 = vmatpush1.bf16.msra.mxu0 0
        %1529 = vmatprep.subr.bf16.mxu0 0
        %1530 = vmatpush1.bf16.msra.mxu0 0
        %1531 = vmatprep.subr.bf16.mxu0 0
        %1532 = vmatpush1.bf16.msra.mxu0 0
        %1533 = vmatprep.subr.bf16.mxu0 0
        %1534 = vmatpush1.bf16.msra.mxu0 0
        %1535 = vmatprep.mubr.bf16.mxu0 0
        %1536 = vmatmul.mubr.bf16.gmra.mrb[0].mxu0 %v1498
        %v1537 = vpop.f32.mrb[0].mxu0
        %v1538 = vadd.f32 0.0, %v1537
        %v1539 = vpop.f32.mrb[0].mxu0
        %v1540 = vpop.f32.mrb[0].mxu0
        %v1541 = vpop.f32.mrb[0].mxu0
        %1542 = vdwg.mxu0
        %v1544 = vsel %vm778, %v1448, 0
        %v1547 = vsel %vm1453, %v508, 0
        %1549 = vmatprep.subr.bf16.mxu0 0
        %1550 = vmatpush1.bf16.msra.mxu0 %v1547
        %1551 = vmatprep.subr.bf16.mxu0 0
        %1552 = vmatpush1.bf16.msra.mxu0 0
        %1553 = vmatprep.subr.bf16.mxu0 0
        %1554 = vmatpush1.bf16.msra.mxu0 0
        %1555 = vmatprep.subr.bf16.mxu0 0
        %1556 = vmatpush1.bf16.msra.mxu0 0
        %1557 = vmatprep.subr.bf16.mxu0 0
        %1558 = vmatpush1.bf16.msra.mxu0 0
        %1559 = vmatprep.subr.bf16.mxu0 0
        %1560 = vmatpush1.bf16.msra.mxu0 0
        %1561 = vmatprep.subr.bf16.mxu0 0
        %1562 = vmatpush1.bf16.msra.mxu0 0
        %1563 = vmatprep.subr.bf16.mxu0 0
        %1564 = vmatpush1.bf16.msra.mxu0 0
        %1565 = vmatprep.subr.bf16.mxu0 0
        %1566 = vmatpush1.bf16.msra.mxu0 0
        %1567 = vmatprep.subr.bf16.mxu0 0
        %1568 = vmatpush1.bf16.msra.mxu0 0
        %1569 = vmatprep.subr.bf16.mxu0 0
        %1570 = vmatpush1.bf16.msra.mxu0 0
        %1571 = vmatprep.subr.bf16.mxu0 0
        %1572 = vmatpush1.bf16.msra.mxu0 0
        %1573 = vmatprep.subr.bf16.mxu0 0
        %1574 = vmatpush1.bf16.msra.mxu0 0
        %1575 = vmatprep.subr.bf16.mxu0 0
        %1576 = vmatpush1.bf16.msra.mxu0 0
        %1577 = vmatprep.subr.bf16.mxu0 0
        %1578 = vmatpush1.bf16.msra.mxu0 0
        %1579 = vmatprep.subr.bf16.mxu0 0
        %1580 = vmatpush1.bf16.msra.mxu0 0
        %1581 = vmatprep.mubr.bf16.mxu0 0
        %1582 = vmatmul.mubr.bf16.gmra.mrb[0].mxu0 %v1544
        %v1583 = vpop.f32.mrb[0].mxu0
        %v1584 = vadd.f32 0.0, %v1583
        %v1585 = vpop.f32.mrb[0].mxu0
        %v1586 = vpop.f32.mrb[0].mxu0
        %v1587 = vpop.f32.mrb[0].mxu0
        %1588 = vdwg.mxu0
        %v1590 = vsel %vm778, %v1449, 0
        %v1593 = vsel %vm1453, %v509, 0
        %1595 = vmatprep.subr.bf16.mxu0 0
        %1596 = vmatpush1.bf16.msra.mxu0 %v1593
        %1597 = vmatprep.subr.bf16.mxu0 0
        %1598 = vmatpush1.bf16.msra.mxu0 0
        %1599 = vmatprep.subr.bf16.mxu0 0
        %1600 = vmatpush1.bf16.msra.mxu0 0
        %1601 = vmatprep.subr.bf16.mxu0 0
        %1602 = vmatpush1.bf16.msra.mxu0 0
        %1603 = vmatprep.subr.bf16.mxu0 0
        %1604 = vmatpush1.bf16.msra.mxu0 0
        %1605 = vmatprep.subr.bf16.mxu0 0
        %1606 = vmatpush1.bf16.msra.mxu0 0
        %1607 = vmatprep.subr.bf16.mxu0 0
        %1608 = vmatpush1.bf16.msra.mxu0 0
        %1609 = vmatprep.subr.bf16.mxu0 0
        %1610 = vmatpush1.bf16.msra.mxu0 0
        %1611 = vmatprep.subr.bf16.mxu0 0
        %1612 = vmatpush1.bf16.msra.mxu0 0
        %1613 = vmatprep.subr.bf16.mxu0 0
        %1614 = vmatpush1.bf16.msra.mxu0 0
        %1615 = vmatprep.subr.bf16.mxu0 0
        %1616 = vmatpush1.bf16.msra.mxu0 0
        %1617 = vmatprep.subr.bf16.mxu0 0
        %1618 = vmatpush1.bf16.msra.mxu0 0
        %1619 = vmatprep.subr.bf16.mxu0 0
        %1620 = vmatpush1.bf16.msra.mxu0 0
        %1621 = vmatprep.subr.bf16.mxu0 0
        %1622 = vmatpush1.bf16.msra.mxu0 0
        %1623 = vmatprep.subr.bf16.mxu0 0
        %1624 = vmatpush1.bf16.msra.mxu0 0
        %1625 = vmatprep.subr.bf16.mxu0 0
        %1626 = vmatpush1.bf16.msra.mxu0 0
        %1627 = vmatprep.mubr.bf16.mxu0 0
        %1628 = vmatmul.mubr.bf16.gmra.mrb[0].mxu0 %v1590
        %v1629 = vpop.f32.mrb[0].mxu0
        %v1630 = vadd.f32 0.0, %v1629
        %v1631 = vpop.f32.mrb[0].mxu0
        %v1632 = vpop.f32.mrb[0].mxu0
        %v1633 = vpop.f32.mrb[0].mxu0
        %1634 = vdwg.mxu0
        %v1635 = vsel %vm574, %v1492, 0.0
        %v1636 = vsel %vm574, %v1538, 0.0
        %v1637 = vadd.f32 %v1635, %v1636
        %v1638 = vsel %vm574, %v1584, 0.0
        %v1639 = vadd.f32 %v1637, %v1638
        %v1640 = vsel %vm574, %v1630, 0.0
        %v1641 = vadd.f32 %v1639, %v1640
        %v1642 = vlaneseq
        %v1643 = vshrl.u32 %v1642, 7
        %v1644 = vsub.s32 0, %v1643
        %v1645 = vrot.slane %v530, %v1644
        %v1646 = vadd.f32 %v1641, %v1645
        %v1647 = vadd.f32 %v1646, %v485
        %v1648 = vsel %vm574, %v1647, 0.0
        %1649 = vadd.xlane.f32.xlu0 %v1648
        %v1650 = vpop.xlane.xlu0 %1649
        %v1651 = vrcp.pop 32.0
        %v1652 = vmul.f32 %v1650, %v1651
        %v1653 = vsub.f32 %v1647, %v1652
        %v1654 = vmul.f32 %v1653, %v1653
        %v1655 = vsel %vm574, %v1654, 0.0
        %1656 = vadd.xlane.f32.xlu0 %v1655
        %v1657 = vpop.xlane.xlu0 %1656
        %v1658 = vmul.f32 %v1657, %v1651
        %v1659 = vadd.f32 %v1658, 1e-05
        %v1660 = vrsqrt.pop %v1659
        %v1661 = vmul.f32 %v1653, %v1660
        %v1662 = vlaneseq
        %v1663 = vshrl.u32 %v1662, 7
        %v1664 = vsub.s32 0, %v1663
        %v1665 = vrot.slane %v531, %v1664
        %v1666 = vmul.f32 %v1661, %v1665
        %v1667 = vlaneseq
        %v1668 = vshrl.u32 %v1667, 7
        %v1669 = vsub.s32 0, %v1668
        %v1670 = vrot.slane %v532, %v1669
        %v1671 = vadd.f32 %v1666, %v1670
        %v1672 = vpack.c.bf16 %v1671, %v1671
        %v1673 = vlaneseq
        %v1674 = vshrl.u32 %v1673, 7
        %v1675 = vsub.s32 0, %v1674
        %v1676 = vrot.slane %v533, %v1675
        %v1681 = vunpack.c.l.b16 %v510
        %v1682 = vunpack.c.l.b16 %v511
        %v1683 = vunpack.c.l.b16 %v512
        %v1684 = vunpack.c.l.b16 %v513
        %v1685 = vpack.c.b16 %v1682, %v1681
        %v1686 = vpack.c.b16 %v1684, %v1683
        %v1690 = vsel %vm574, %v1672, 0
        %1692 = vmatprep.subr.bf16.mxu0 0
        %1693 = vmatpush1.bf16.msra.mxu0 %v1685
        %1694 = vmatprep.subr.bf16.mxu0 0
        %1695 = vmatpush1.bf16.msra.mxu0 %v1686
        %1696 = vmatprep.subr.bf16.mxu0 0
        %1697 = vmatpush1.bf16.msra.mxu0 0
        %1698 = vmatprep.subr.bf16.mxu0 0
        %1699 = vmatpush1.bf16.msra.mxu0 0
        %1700 = vmatprep.subr.bf16.mxu0 0
        %1701 = vmatpush1.bf16.msra.mxu0 0
        %1702 = vmatprep.subr.bf16.mxu0 0
        %1703 = vmatpush1.bf16.msra.mxu0 0
        %1704 = vmatprep.subr.bf16.mxu0 0
        %1705 = vmatpush1.bf16.msra.mxu0 0
        %1706 = vmatprep.subr.bf16.mxu0 0
        %1707 = vmatpush1.bf16.msra.mxu0 0
        %1708 = vmatprep.subr.bf16.mxu0 0
        %1709 = vmatpush1.bf16.msra.mxu0 0
        %1710 = vmatprep.subr.bf16.mxu0 0
        %1711 = vmatpush1.bf16.msra.mxu0 0
        %1712 = vmatprep.subr.bf16.mxu0 0
        %1713 = vmatpush1.bf16.msra.mxu0 0
        %1714 = vmatprep.subr.bf16.mxu0 0
        %1715 = vmatpush1.bf16.msra.mxu0 0
        %1716 = vmatprep.subr.bf16.mxu0 0
        %1717 = vmatpush1.bf16.msra.mxu0 0
        %1718 = vmatprep.subr.bf16.mxu0 0
        %1719 = vmatpush1.bf16.msra.mxu0 0
        %1720 = vmatprep.subr.bf16.mxu0 0
        %1721 = vmatpush1.bf16.msra.mxu0 0
        %1722 = vmatprep.subr.bf16.mxu0 0
        %1723 = vmatpush1.bf16.msra.mxu0 0
        %1724 = vmatprep.mubr.bf16.mxu0 0
        %1725 = vmatmul.mubr.bf16.gmra.mrb[0].mxu0 %v1690
        %v1726 = vpop.f32.mrb[0].mxu0
        %v1727 = vadd.f32 %v1676, %v1726
        %v1728 = vpop.f32.mrb[0].mxu0
        %v1729 = vpop.f32.mrb[0].mxu0
        %v1730 = vpop.f32.mrb[0].mxu0
        %1731 = vdwg.mxu0
        %v1732 = vmax.f32 %v1727, 0.0
        %v1733 = vpack.c.bf16 %v1732, %v1732
        %v1734 = vlaneseq
        %v1735 = vshrl.u32 %v1734, 7
        %v1736 = vsub.s32 0, %v1735
        %v1737 = vrot.slane %v534, %v1736
        %v1754 = vunpack.c.l.b16 %v514
        %v1755 = vunpack.c.l.b16 %v515
        %v1756 = vunpack.c.l.b16 %v516
        %v1757 = vunpack.c.l.b16 %v517
        %v1758 = vunpack.c.l.b16 %v518
        %v1759 = vunpack.c.l.b16 %v519
        %v1760 = vunpack.c.l.b16 %v520
        %v1761 = vunpack.c.l.b16 %v521
        %v1762 = vunpack.c.l.b16 %v522
        %v1763 = vunpack.c.l.b16 %v523
        %v1764 = vunpack.c.l.b16 %v524
        %v1765 = vunpack.c.l.b16 %v525
        %v1766 = vunpack.c.l.b16 %v526
        %v1767 = vunpack.c.l.b16 %v527
        %v1768 = vunpack.c.l.b16 %v528
        %v1769 = vunpack.c.l.b16 %v529
        %v1770 = vpack.c.b16 %v1755, %v1754
        %v1771 = vpack.c.b16 %v1757, %v1756
        %v1772 = vpack.c.b16 %v1759, %v1758
        %v1773 = vpack.c.b16 %v1761, %v1760
        %v1774 = vpack.c.b16 %v1763, %v1762
        %v1775 = vpack.c.b16 %v1765, %v1764
        %v1776 = vpack.c.b16 %v1767, %v1766
        %v1777 = vpack.c.b16 %v1769, %v1768
        %1786 = vmatprep.subr.bf16.mxu0 0
        %1787 = vmatpush1.bf16.msra.mxu0 %v1770
        %1788 = vmatprep.subr.bf16.mxu0 0
        %1789 = vmatpush1.bf16.msra.mxu0 %v1771
        %1790 = vmatprep.subr.bf16.mxu0 0
        %1791 = vmatpush1.bf16.msra.mxu0 %v1772
        %1792 = vmatprep.subr.bf16.mxu0 0
        %1793 = vmatpush1.bf16.msra.mxu0 %v1773
        %1794 = vmatprep.subr.bf16.mxu0 0
        %1795 = vmatpush1.bf16.msra.mxu0 %v1774
        %1796 = vmatprep.subr.bf16.mxu0 0
        %1797 = vmatpush1.bf16.msra.mxu0 %v1775
        %1798 = vmatprep.subr.bf16.mxu0 0
        %1799 = vmatpush1.bf16.msra.mxu0 %v1776
        %1800 = vmatprep.subr.bf16.mxu0 0
        %1801 = vmatpush1.bf16.msra.mxu0 %v1777
        %1802 = vmatprep.subr.bf16.mxu0 0
        %1803 = vmatpush1.bf16.msra.mxu0 0
        %1804 = vmatprep.subr.bf16.mxu0 0
        %1805 = vmatpush1.bf16.msra.mxu0 0
        %1806 = vmatprep.subr.bf16.mxu0 0
        %1807 = vmatpush1.bf16.msra.mxu0 0
        %1808 = vmatprep.subr.bf16.mxu0 0
        %1809 = vmatpush1.bf16.msra.mxu0 0
        %1810 = vmatprep.subr.bf16.mxu0 0
        %1811 = vmatpush1.bf16.msra.mxu0 0
        %1812 = vmatprep.subr.bf16.mxu0 0
        %1813 = vmatpush1.bf16.msra.mxu0 0
        %1814 = vmatprep.subr.bf16.mxu0 0
        %1815 = vmatpush1.bf16.msra.mxu0 0
        %1816 = vmatprep.subr.bf16.mxu0 0
        %1817 = vmatpush1.bf16.msra.mxu0 0
        %1818 = vmatprep.mubr.bf16.mxu0 0
        %1819 = vmatmul.mubr.bf16.gmra.mrb[0].mxu0 %v1733
        %v1820 = vpop.f32.mrb[0].mxu0
        %v1821 = vadd.f32 %v1737, %v1820
        %v1822 = vpop.f32.mrb[0].mxu0
        %v1823 = vpop.f32.mrb[0].mxu0
        %v1824 = vpop.f32.mrb[0].mxu0
        %1825 = vdwg.mxu0
        %v1826 = vadd.f32 %v1821, %v1671
        %v1827 = vsel %vm574, %v1826, 0.0
        %1828 = vadd.xlane.f32.xlu0 %v1827
        %v1829 = vpop.xlane.xlu0 %1828
        %v1830 = vmul.f32 %v1829, %v1651
        %v1831 = vsub.f32 %v1826, %v1830
        %v1832 = vmul.f32 %v1831, %v1831
        %v1833 = vsel %vm574, %v1832, 0.0
        %1834 = vadd.xlane.f32.xlu0 %v1833
        %v1835 = vpop.xlane.xlu0 %1834
        %v1836 = vmul.f32 %v1835, %v1651
        %v1837 = vadd.f32 %v1836, 1e-05
        %v1838 = vrsqrt.pop %v1837
        %v1839 = vmul.f32 %v1831, %v1838
        %v1840 = vlaneseq
        %v1841 = vshrl.u32 %v1840, 7
        %v1842 = vsub.s32 0, %v1841
        %v1843 = vrot.slane %v535, %v1842
        %v1844 = vmul.f32 %v1839, %v1843
        %v1845 = vlaneseq
        %v1846 = vshrl.u32 %v1845, 7
        %v1847 = vsub.s32 0, %v1846
        %v1848 = vrot.slane %v536, %v1847
        %v1849 = vadd.f32 %v1844, %v1848
        %1850 = vst.msk [vmem:[%s435] sm:$0xff] %vm574, %v1849
        %v1851 = vpack.c.bf16 %v1135, %v1135
        %v1852 = vpack.c.bf16 %v1137, %v1137
        %v1853 = vpack.c.bf16 %v1139, %v1139
        %v1854 = vpack.c.bf16 %v1141, %v1141
        %vm1855 = vcmask 60416
        %1856 = vst.msk [vmem:[%s441] sm:$0xf] %vm1855, %v1851
        %1857 = vst.msk [vmem:[%s441 + $0x4] sm:$0xf] %vm1855, %v1852
        %1858 = vst.msk [vmem:[%s441 + $0x8] sm:$0xf] %vm1855, %v1853
        %1859 = vst.msk [vmem:[%s441 + $0xc] sm:$0xf] %vm1855, %v1854
        %s1860 = sand.u32 %s252, 1
        %s1861 = scalar_lea.sflag [#allocation3], %s1860
        %s1862 = sand.u32 %s252, 1
        %s1863 = smul.addr %s1862, 8
        %s1864 = scalar_lea.vmem [#allocation2], %s1863
        %s1865 = sand.u32 %s280, 1
        %s1866 = sand.u32 %s280, 1
        %s1867 = smul.addr %s1866, 16
        %s1868 = scalar_lea.vmem [#allocation4], %s1867
        // Predicated region
        $region57: #{encoder_forward.1} parent=51 // pred_check
          %p1869 = pneg %p262
        $region58: #{encoder_forward.1} parent=51 // pred_check_branch
          %1871 = sbr.rel (%p1869) target = $region60
        $region59: #{encoder_forward.1} parent=51 // pred_region
          %s1873 = ssub.s32 128, 128
          %1874 = vsyncadd %s1861, %s1873
          %s1875 = smul.addr %s28, 128
          %s1876 = scalar_lea.hbm %s8, %s1875
          %s1878 = sshll.u32 %s1864, 4
          %s1879 = int_to_ptr.vmem [resolvable:$true] %s1878
          %1881 = dma.vmem_to_hbm [thread:$0]  %s1879, 128, %s1876, %s1861
        $region60: #{encoder_forward.1} parent=51 // pred_fallthru
          _
        // Predicated region
        $region61: #{encoder_forward.1} parent=51 // pred_check
          %p1882 = pneg %p290
        $region62: #{encoder_forward.1} parent=51 // pred_check_branch
          %1884 = sbr.rel (%p1882) target = $region64
        $region63: #{encoder_forward.1} parent=51 // pred_region
          %s1885 = smul.addr %s29, 8
          %s1886 = sadd.s32 %s28, %s1885
          %s1887 = smul.addr %s1886, 4
          %s1888 = scalar_lea.vmem %s9, %s1887
          // Predicated region
          $region65: #{encoder_forward.1} parent=63 // pred_check
            _
          $region66: #{encoder_forward.1} parent=63 // pred_check_branch
            %1890 = sbr.rel (0) target = $region68
          $region67: #{encoder_forward.1} parent=63 // pred_region
            // Predicated region
            $region69: #{encoder_forward.1} parent=67 // pred_check
              _
            $region70: #{encoder_forward.1} parent=67 // pred_check_branch
              %1892 = sbr.rel target = $region72
            $region71: #{encoder_forward.1} parent=67 // pred_region
              // Predicated region
              $region84: #{encoder_forward.1} parent=71 // pred_check
                _
              $region85: #{encoder_forward.1} parent=71 // pred_check_branch
                %1913 = sbr.rel (0) target = $region87
              $region86: #{encoder_forward.1} parent=71 // pred_region
                loop: start=0, step=1, limit=1
                $region88: #{encoder_forward.1} parent=86 // loop_pre_header
                  _
                $region89: #{encoder_forward.1} parent=86 // loop_header
                  %s1915 = sphi 0, %s1919
                  %p1916 = scmp.ge.s32.totalorder %s1915, 1
                  %s1920 = sphi %s1868, %s1868
                  %s1921 = sphi %s1888, %s1888
                $region90: #{encoder_forward.1} parent=86 // loop_header_branch
                  %1918 = sbr.rel (%p1916) target = $region94
                $region91: #{encoder_forward.1} parent=86 // loop_body
                  _
                $region92: #{encoder_forward.1} parent=86 // loop_footer
                  %s1919 = sadd.s32 1, %s1915
                $region93: #{encoder_forward.1} parent=86 // loop_footer_branch
                  %1914 = sbr.rel target = $region89
                $region94: #{encoder_forward.1} parent=86 // loop_exit
                  _
                loop: start=0, step=1, limit=1
                $region95: #{encoder_forward.1} parent=86 // loop_pre_header
                  _
                $region96: #{encoder_forward.1} parent=86 // loop_header
                  %s1924 = sphi 0, %s1928
                  %p1925 = scmp.ge.s32.totalorder %s1924, 1
                  %s1929 = sphi %s1868, %s1868
                  %s1930 = sphi %s1888, %s1888
                $region97: #{encoder_forward.1} parent=86 // loop_header_branch
                  %1927 = sbr.rel (%p1925) target = $region101
                $region98: #{encoder_forward.1} parent=86 // loop_body
                  %v1931 = vld [vmem:[%s1929] sm:$0xf]
                  %1932 = vst [vmem:[%s1930] sm:$0xf] %v1931
                  %v1933 = vld [vmem:[%s1929 + $0x4] sm:$0xf]
                  %1934 = vst [vmem:[%s1930 + $0x8] sm:$0xf] %v1933
                  %v1935 = vld [vmem:[%s1929 + $0x8] sm:$0xf]
                  %1936 = vst [vmem:[%s1930 + $0x10] sm:$0xf] %v1935
                  %v1937 = vld [vmem:[%s1929 + $0xc] sm:$0xf]
                  %1938 = vst [vmem:[%s1930 + $0x18] sm:$0xf] %v1937
                $region99: #{encoder_forward.1} parent=86 // loop_footer
                  %s1928 = sadd.s32 1, %s1924
                $region100: #{encoder_forward.1} parent=86 // loop_footer_branch
                  %1923 = sbr.rel target = $region96
                $region101: #{encoder_forward.1} parent=86 // loop_exit
                  _
              $region87: #{encoder_forward.1} parent=71 // pred_fallthru
                _
            $region72: #{encoder_forward.1} parent=67 // pred_fallthru
              _
            // Predicated region
            $region73: #{encoder_forward.1} parent=67 // pred_check
              _
            $region74: #{encoder_forward.1} parent=67 // pred_check_branch
              %1894 = sbr.rel (0) target = $region76
            $region75: #{encoder_forward.1} parent=67 // pred_region
              loop: start=0, step=1, limit=1
              $region77: #{encoder_forward.1} parent=75 // loop_pre_header
                _
              $region78: #{encoder_forward.1} parent=75 // loop_header
                %s1897 = sphi 0, %s1901
                %p1898 = scmp.ge.s32.totalorder %s1897, 1
                %s1902 = sphi %s1868, %s1868
                %s1903 = sphi %s1888, %s1888
              $region79: #{encoder_forward.1} parent=75 // loop_header_branch
                %1900 = sbr.rel (%p1898) target = $region83
              $region80: #{encoder_forward.1} parent=75 // loop_body
                %v1904 = vld [vmem:[%s1902] sm:$0xf]
                %1905 = vst [vmem:[%s1903] sm:$0xf] %v1904
                %v1906 = vld [vmem:[%s1902 + $0x4] sm:$0xf]
                %1907 = vst [vmem:[%s1903 + $0x8] sm:$0xf] %v1906
                %v1908 = vld [vmem:[%s1902 + $0x8] sm:$0xf]
                %1909 = vst [vmem:[%s1903 + $0x10] sm:$0xf] %v1908
                %v1910 = vld [vmem:[%s1902 + $0xc] sm:$0xf]
                %1911 = vst [vmem:[%s1903 + $0x18] sm:$0xf] %v1910
              $region81: #{encoder_forward.1} parent=75 // loop_footer
                %s1901 = sadd.s32 1, %s1897
              $region82: #{encoder_forward.1} parent=75 // loop_footer_branch
                %1896 = sbr.rel target = $region78
              $region83: #{encoder_forward.1} parent=75 // loop_exit
                _
            $region76: #{encoder_forward.1} parent=67 // pred_fallthru
              _
          $region68: #{encoder_forward.1} parent=63 // pred_fallthru
            _
          %1939 = vnop
        $region64: #{encoder_forward.1} parent=51 // pred_fallthru
          _
      $region52: #{encoder_forward.1} parent=5 // pred_fallthru
        _
      %p1940 = scmp.le.s32.totalorder 2, %s19
      // Predicated region
      $region102: #{encoder_forward.1} parent=5 // pred_check
        %p1941 = pneg %p1940
      $region103: #{encoder_forward.1} parent=5 // pred_check_branch
        %1943 = sbr.rel (%p1941) target = $region105
      $region104: #{encoder_forward.1} parent=5 // pred_region
        %s1944 = ssub.s32 %s19, 2
        // Predicated region
        $region106: #{encoder_forward.1} parent=104 // pred_check
          %p1945 = pneg %p268
        $region107: #{encoder_forward.1} parent=104 // pred_check_branch
          %1947 = sbr.rel (%p1945) target = $region109
        $region108: #{encoder_forward.1} parent=104 // pred_region
          %s1948 = sand.u32 %s253, 1
          %s1949 = scalar_lea.sflag [#allocation3], %s1948
          %s1950 = sand.u32 %s253, 1
          %s1951 = smul.addr %s1950, 8
          %s1952 = scalar_lea.vmem [#allocation2], %s1951
          %1953 = dma.done %s1949, 128
        $region109: #{encoder_forward.1} parent=104 // pred_fallthru
          _
        // Predicated region
        $region110: #{encoder_forward.1} parent=104 // pred_check
          %p1954 = pneg %p296
        $region111: #{encoder_forward.1} parent=104 // pred_check_branch
          %1956 = sbr.rel (%p1954) target = $region113
        $region112: #{encoder_forward.1} parent=104 // pred_region
          %s1957 = sand.u32 %s281, 1
          %s1958 = sand.u32 %s281, 1
          %s1959 = smul.addr %s1958, 16
          %s1960 = scalar_lea.vmem [#allocation4], %s1959
        $region113: #{encoder_forward.1} parent=104 // pred_fallthru
          _
      $region105: #{encoder_forward.1} parent=5 // pred_fallthru
        _
    $region6: #{encoder_forward.1} parent=1 // loop_footer
      %s23 = sadd.s32 1, %s19
    $region7: #{encoder_forward.1} parent=1 // loop_footer_branch
      %18 = sbr.rel target = $region3
    $region8: #{encoder_forward.1} parent=1 // loop_exit
      _
    %1961 = vsyncpa [#allocation3], 1
    %s1962 = scalar_lea.sflag [#allocation3], 1
    %1963 = vsyncpa %s1962, 1

</llo_original>
